<compile_context>
chip_gen: v7x
topology: tpu7x:2x2x1
jax: 0.10.0
libtpu: 0.0.40
codegen_flags: <defaults>
</compile_context>

<pallas_src>
import functools

import jax
import jax.numpy as jnp
from jax import lax
from jax.experimental import pallas as pl
from jax.experimental.pallas import tpu as pltpu


def _multi_prior_kernel(x_ref, w1_ref, b1_ref, w2_ref, b2_ref, pw_ref,
                        o_ref, *, n_priors, n_chan, n_hid, chunk_rows):
    """One grid step: one batch element (b) x one spatial tile (t).

    x_ref  : [1, C, S, 128] VMEM  dense input tile (S sublane rows per channel)
    w1_ref : [P*C*HID] SMEM  flat, idx (p*C + c)*HID + j
    b1_ref : [P*HID]   SMEM
    w2_ref : [P*HID*C] SMEM  flat, idx (p*HID + j)*C + c
    b2_ref : [P*C]     SMEM
    pw_ref : [P]       SMEM  per-prior loss weights
    o_ref  : [1, chunk_rows, 128] VMEM  per-batch partial sums, resident across t
    """
    t = pl.program_id(1)

    @pl.when(t == 0)
    def _():
        o_ref[...] = jnp.zeros_like(o_ref)

    s_rows = x_ref.shape[2]
    n_chunks = s_rows // chunk_rows

    # Hoist all (loop-invariant) scalar weight reads out of the chunk loop.
    w1 = [[[w1_ref[(p * n_chan + c) * n_hid + j] for j in range(n_hid)]
           for c in range(n_chan)] for p in range(n_priors)]
    b1 = [[b1_ref[p * n_hid + j] for j in range(n_hid)]
          for p in range(n_priors)]
    w2 = [[[w2_ref[(p * n_hid + j) * n_chan + c] for c in range(n_chan)]
           for j in range(n_hid)] for p in range(n_priors)]
    b2 = [[b2_ref[p * n_chan + c] for c in range(n_chan)]
          for p in range(n_priors)]
    pw = [pw_ref[p] for p in range(n_priors)]

    def chunk_body(ci, acc):
        r0 = ci * chunk_rows
        if not isinstance(r0, int):
            r0 = pl.multiple_of(r0, chunk_rows)
        # Dense [chunk_rows, 128] views per channel (full-sublane vregs).
        xs = [x_ref[0, c, pl.ds(r0, chunk_rows), :] for c in range(n_chan)]
        sq = jnp.zeros((chunk_rows, 128), jnp.float32)
        for p in range(n_priors):
            # phi part 1: 1x1 conv C -> HID, bias, ReLU  (VPU broadcast-FMA).
            hs = []
            for j in range(n_hid):
                h = w1[p][0][j] * xs[0]
                for c in range(1, n_chan):
                    h = h + w1[p][c][j] * xs[c]
                hs.append(jnp.maximum(h + b1[p][j], 0.0))
            # phi part 2: 1x1 conv HID -> C, bias; squared error vs input.
            ep = jnp.zeros((chunk_rows, 128), jnp.float32)
            for c in range(n_chan):
                y = w2[p][0][c] * hs[0]
                for j in range(1, n_hid):
                    y = y + w2[p][j][c] * hs[j]
                d = xs[c] - (y + b2[p][c])
                ep = ep + d * d
            sq = sq + pw[p] * ep          # loss weight applied once per prior
        return acc + sq

    acc0 = jnp.zeros((chunk_rows, 128), jnp.float32)
    if n_chunks == 1:
        acc = chunk_body(0, acc0)
    else:
        unroll = n_chunks if n_chunks <= 8 else 4
        acc = lax.fori_loop(0, n_chunks, chunk_body, acc0, unroll=unroll)

    # Accumulate into the resident (lane+sublane dense) output block.
    o_ref[...] += acc[None]


def _tile_rows(n_rows, max_rows=256):
    """Largest divisor of n_rows that is a multiple of 8 and <= max_rows."""
    best = None
    for cand in range(8, min(n_rows, max_rows) + 1, 8):
        if n_rows % cand == 0:
            best = cand
    return best if best is not None else n_rows


def multi_prior_forward(state_nchw, w1s, b1s, w2s, b2s, prior_ws):
    """MultiPrior.forward as one Pallas kernel + tiny wrapper reduction.

    state_nchw: [B, C, H, W] float32
    w1s: [P, C, HID]   b1s: [P, HID]   w2s: [P, HID, C]   b2s: [P, C]
    prior_ws: [P] per-prior loss weights
    returns: scalar loss
    """
    B, C, H, W = state_nchw.shape
    P, _, HID = w1s.shape
    HW = H * W
    # TODO(synk): spatial sizes that are not a multiple of 128 would need a
    # masked tail tile; not required for this instantiation.
    assert HW % 128 == 0, "H*W must be a multiple of 128"
    R = HW // 128                       # dense sublane rows per (batch, channel)
    S = _tile_rows(R)                   # sublane rows per grid step
    chunk_rows = 8 if S % 8 == 0 else S

    # Free contiguous reshape: channel-major, spatial packed dense (rows, 128).
    x4 = state_nchw.reshape(B, C, R, 128).astype(jnp.float32)

    w1f = w1s.reshape(-1).astype(jnp.float32)
    b1f = b1s.reshape(-1).astype(jnp.float32)
    w2f = w2s.reshape(-1).astype(jnp.float32)
    b2f = b2s.reshape(-1).astype(jnp.float32)
    pwf = prior_ws.reshape(-1).astype(jnp.float32)

    kernel = functools.partial(
        _multi_prior_kernel, n_priors=P, n_chan=C, n_hid=HID,
        chunk_rows=chunk_rows)

    smem_spec = pl.BlockSpec(memory_space=pltpu.MemorySpace.SMEM)

    # Footprint-derived VMEM limit (double-buffered input + resident output).
    in_block_bytes = C * S * 128 * 4
    out_block_bytes = chunk_rows * 128 * 4
    vmem_limit = int(min(max(2 * in_block_bytes + 2 * out_block_bytes
                             + (2 << 20), 4 << 20), 48 << 20))

    partials = pl.pallas_call(
        kernel,
        out_shape=jax.ShapeDtypeStruct((B, chunk_rows, 128), jnp.float32),
        grid_spec=pltpu.PrefetchScalarGridSpec(
            num_scalar_prefetch=0,
            grid=(B, R // S),
            in_specs=[
                pl.BlockSpec((1, C, S, 128), lambda b, t: (b, 0, t, 0)),
                smem_spec,   # w1 (flat)
                smem_spec,   # b1
                smem_spec,   # w2 (flat)
                smem_spec,   # b2
                smem_spec,   # prior weights
            ],
            out_specs=pl.BlockSpec((1, chunk_rows, 128),
                                   lambda b, t: (b, 0, 0)),
        ),
        compiler_params=pltpu.CompilerParams(
            dimension_semantics=("parallel", "arbitrary"),
            vmem_limit_bytes=vmem_limit,
        ),
    )(x4, w1f, b1f, w2f, b2f, pwf)

    # Tiny final cross-lane / cross-batch reduce + mean scale in the wrapper.
    return jnp.sum(partials) / (B * C * H * W)


def multi_prior_forward_ref(state_nchw, w1s, b1s, w2s, b2s, prior_ws):
    """Pure-JAX reference mirroring the PyTorch semantics."""
    B, C, H, W = state_nchw.shape
    x2d = jnp.transpose(state_nchw, (0, 2, 3, 1)).reshape(-1, C)
    total = jnp.float32(0.0)
    for p in range(w1s.shape[0]):
        h = jnp.maximum(x2d @ w1s[p] + b1s[p][None, :], 0.0)
        y = h @ w2s[p] + b2s[p][None, :]
        total = total + prior_ws[p] * jnp.mean((x2d - y) ** 2)
    return total


def _run_case(key, B, C, H, W, HID, P):
    k_x, k_w1, k_b1, k_w2, k_b2, k_pw = jax.random.split(key, 6)
    state = jax.random.normal(k_x, (B, C, H, W), dtype=jnp.float32)
    # Deterministic 1x1-conv-autoencoder parameters per prior, stored as
    # [in, out] matmul weights (== Conv2d weight [out, in, 1, 1] transposed).
    w1s = 0.1 * jax.random.normal(k_w1, (P, C, HID), dtype=jnp.float32)
    b1s = 0.1 * jax.random.normal(k_b1, (P, HID), dtype=jnp.float32)
    w2s = 0.1 * jax.random.normal(k_w2, (P, HID, C), dtype=jnp.float32)
    b2s = 0.1 * jax.random.normal(k_b2, (P, C), dtype=jnp.float32)
    prior_ws = 0.5 + jax.random.uniform(k_pw, (P,), dtype=jnp.float32)

    loss = multi_prior_forward(state, w1s, b1s, w2s, b2s, prior_ws)
    loss = jax.block_until_ready(loss)
    ref = multi_prior_forward_ref(state, w1s, b1s, w2s, b2s, prior_ws)
    assert jnp.allclose(loss, ref, rtol=2e-5, atol=1e-5), (
        (B, C, H, W, HID, P), loss, ref)


if __name__ == "__main__":
    key = jax.random.PRNGKey(0)
    k0, k1, k2 = jax.random.split(key, 3)

    # Small primary case (HW//128 = 2 rows: full-dim fallback tile).
    _run_case(k0, B=2, C=4, H=16, W=16, HID=8, P=2)
    # (8,128)-aligned single-chunk case.
    _run_case(k1, B=2, C=4, H=32, W=32, HID=8, P=2)
    # Multi-chunk fori_loop + multi-tile accumulation across the t axis.
    _run_case(k2, B=2, C=4, H=256, W=256, HID=8, P=2)

    print("KERNEL_OK")
</pallas_src>

<mosaic_0001>
module attributes {stable_mosaic.version = 11 : i64} {
  func.func @_multi_prior_kernel(%arg0: i32, %arg1: i32, %arg2: memref<1x4x2x128xf32, #tpu.memory_space<vmem>>, %arg3: memref<64xf32, #tpu.memory_space<smem>>, %arg4: memref<16xf32, #tpu.memory_space<smem>>, %arg5: memref<64xf32, #tpu.memory_space<smem>>, %arg6: memref<8xf32, #tpu.memory_space<smem>>, %arg7: memref<2xf32, #tpu.memory_space<smem>>, %arg8: memref<1x2x128xf32, #tpu.memory_space<vmem>>) attributes {dimension_semantics = [#tpu.dimension_semantics<parallel>, #tpu.dimension_semantics<arbitrary>], iteration_bounds = array<i64: 2, 1>, scalar_prefetch = 0 : i64, scratch_operands = 0 : i64, tpu.core_type = #tpu.core_type<tc>, window_params = [{transform_indices = @transform_0, window_bounds = array<i64: 1, 4, 2, 128>}, {transform_indices = @transform_1, window_bounds = array<i64: 64>}, {transform_indices = @transform_2, window_bounds = array<i64: 16>}, {transform_indices = @transform_3, window_bounds = array<i64: 64>}, {transform_indices = @transform_4, window_bounds = array<i64: 8>}, {transform_indices = @transform_5, window_bounds = array<i64: 2>}, {transform_indices = @transform_6, window_bounds = array<i64: 1, 2, 128>}]} {
    %c0_i32 = arith.constant 0 : i32
    %0 = arith.cmpi eq, %arg1, %c0_i32 : i32
    %1 = arith.extui %0 : i1 to i32
    %c0_i32_0 = arith.constant 0 : i32
    %2 = arith.cmpi ne, %1, %c0_i32_0 : i32
    scf.if %2 {
      %cst_132 = arith.constant 0.000000e+00 : f32
      %644 = vector.broadcast %cst_132 : f32 to vector<1x2x128xf32>
      %c0_133 = arith.constant 0 : index
      %c0_134 = arith.constant 0 : index
      %c0_135 = arith.constant 0 : index
      %645 = vector.load %arg8[%c0_133, %c0_134, %c0_135] : memref<1x2x128xf32, #tpu.memory_space<vmem>>, vector<1x2x128xf32>
      tpu.vector_store %arg8[%c0_133, %c0_134, %c0_135], %644 {strides = array<i32>} : memref<1x2x128xf32, #tpu.memory_space<vmem>>, vector<1x2x128xf32>,
    } else {
    }
    %c0 = arith.constant 0 : index
    %3 = memref.load %arg3[%c0] : memref<64xf32, #tpu.memory_space<smem>>
    %c1 = arith.constant 1 : index
    %4 = memref.load %arg3[%c1] : memref<64xf32, #tpu.memory_space<smem>>
    %c2 = arith.constant 2 : index
    %5 = memref.load %arg3[%c2] : memref<64xf32, #tpu.memory_space<smem>>
    %c3 = arith.constant 3 : index
    %6 = memref.load %arg3[%c3] : memref<64xf32, #tpu.memory_space<smem>>
    %c4 = arith.constant 4 : index
    %7 = memref.load %arg3[%c4] : memref<64xf32, #tpu.memory_space<smem>>
    %c5 = arith.constant 5 : index
    %8 = memref.load %arg3[%c5] : memref<64xf32, #tpu.memory_space<smem>>
    %c6 = arith.constant 6 : index
    %9 = memref.load %arg3[%c6] : memref<64xf32, #tpu.memory_space<smem>>
    %c7 = arith.constant 7 : index
    %10 = memref.load %arg3[%c7] : memref<64xf32, #tpu.memory_space<smem>>
    %c8 = arith.constant 8 : index
    %11 = memref.load %arg3[%c8] : memref<64xf32, #tpu.memory_space<smem>>
    %c9 = arith.constant 9 : index
    %12 = memref.load %arg3[%c9] : memref<64xf32, #tpu.memory_space<smem>>
    %c10 = arith.constant 10 : index
    %13 = memref.load %arg3[%c10] : memref<64xf32, #tpu.memory_space<smem>>
    %c11 = arith.constant 11 : index
    %14 = memref.load %arg3[%c11] : memref<64xf32, #tpu.memory_space<smem>>
    %c12 = arith.constant 12 : index
    %15 = memref.load %arg3[%c12] : memref<64xf32, #tpu.memory_space<smem>>
    %c13 = arith.constant 13 : index
    %16 = memref.load %arg3[%c13] : memref<64xf32, #tpu.memory_space<smem>>
    %c14 = arith.constant 14 : index
    %17 = memref.load %arg3[%c14] : memref<64xf32, #tpu.memory_space<smem>>
    %c15 = arith.constant 15 : index
    %18 = memref.load %arg3[%c15] : memref<64xf32, #tpu.memory_space<smem>>
    %c16 = arith.constant 16 : index
    %19 = memref.load %arg3[%c16] : memref<64xf32, #tpu.memory_space<smem>>
    %c17 = arith.constant 17 : index
    %20 = memref.load %arg3[%c17] : memref<64xf32, #tpu.memory_space<smem>>
    %c18 = arith.constant 18 : index
    %21 = memref.load %arg3[%c18] : memref<64xf32, #tpu.memory_space<smem>>
    %c19 = arith.constant 19 : index
    %22 = memref.load %arg3[%c19] : memref<64xf32, #tpu.memory_space<smem>>
    %c20 = arith.constant 20 : index
    %23 = memref.load %arg3[%c20] : memref<64xf32, #tpu.memory_space<smem>>
    %c21 = arith.constant 21 : index
    %24 = memref.load %arg3[%c21] : memref<64xf32, #tpu.memory_space<smem>>
    %c22 = arith.constant 22 : index
    %25 = memref.load %arg3[%c22] : memref<64xf32, #tpu.memory_space<smem>>
    %c23 = arith.constant 23 : index
    %26 = memref.load %arg3[%c23] : memref<64xf32, #tpu.memory_space<smem>>
    %c24 = arith.constant 24 : index
    %27 = memref.load %arg3[%c24] : memref<64xf32, #tpu.memory_space<smem>>
    %c25 = arith.constant 25 : index
    %28 = memref.load %arg3[%c25] : memref<64xf32, #tpu.memory_space<smem>>
    %c26 = arith.constant 26 : index
    %29 = memref.load %arg3[%c26] : memref<64xf32, #tpu.memory_space<smem>>
    %c27 = arith.constant 27 : index
    %30 = memref.load %arg3[%c27] : memref<64xf32, #tpu.memory_space<smem>>
    %c28 = arith.constant 28 : index
    %31 = memref.load %arg3[%c28] : memref<64xf32, #tpu.memory_space<smem>>
    %c29 = arith.constant 29 : index
    %32 = memref.load %arg3[%c29] : memref<64xf32, #tpu.memory_space<smem>>
    %c30 = arith.constant 30 : index
    %33 = memref.load %arg3[%c30] : memref<64xf32, #tpu.memory_space<smem>>
    %c31 = arith.constant 31 : index
    %34 = memref.load %arg3[%c31] : memref<64xf32, #tpu.memory_space<smem>>
    %c32 = arith.constant 32 : index
    %35 = memref.load %arg3[%c32] : memref<64xf32, #tpu.memory_space<smem>>
    %c33 = arith.constant 33 : index
    %36 = memref.load %arg3[%c33] : memref<64xf32, #tpu.memory_space<smem>>
    %c34 = arith.constant 34 : index
    %37 = memref.load %arg3[%c34] : memref<64xf32, #tpu.memory_space<smem>>
    %c35 = arith.constant 35 : index
    %38 = memref.load %arg3[%c35] : memref<64xf32, #tpu.memory_space<smem>>
    %c36 = arith.constant 36 : index
    %39 = memref.load %arg3[%c36] : memref<64xf32, #tpu.memory_space<smem>>
    %c37 = arith.constant 37 : index
    %40 = memref.load %arg3[%c37] : memref<64xf32, #tpu.memory_space<smem>>
    %c38 = arith.constant 38 : index
    %41 = memref.load %arg3[%c38] : memref<64xf32, #tpu.memory_space<smem>>
    %c39 = arith.constant 39 : index
    %42 = memref.load %arg3[%c39] : memref<64xf32, #tpu.memory_space<smem>>
    %c40 = arith.constant 40 : index
    %43 = memref.load %arg3[%c40] : memref<64xf32, #tpu.memory_space<smem>>
    %c41 = arith.constant 41 : index
    %44 = memref.load %arg3[%c41] : memref<64xf32, #tpu.memory_space<smem>>
    %c42 = arith.constant 42 : index
    %45 = memref.load %arg3[%c42] : memref<64xf32, #tpu.memory_space<smem>>
    %c43 = arith.constant 43 : index
    %46 = memref.load %arg3[%c43] : memref<64xf32, #tpu.memory_space<smem>>
    %c44 = arith.constant 44 : index
    %47 = memref.load %arg3[%c44] : memref<64xf32, #tpu.memory_space<smem>>
    %c45 = arith.constant 45 : index
    %48 = memref.load %arg3[%c45] : memref<64xf32, #tpu.memory_space<smem>>
    %c46 = arith.constant 46 : index
    %49 = memref.load %arg3[%c46] : memref<64xf32, #tpu.memory_space<smem>>
    %c47 = arith.constant 47 : index
    %50 = memref.load %arg3[%c47] : memref<64xf32, #tpu.memory_space<smem>>
    %c48 = arith.constant 48 : index
    %51 = memref.load %arg3[%c48] : memref<64xf32, #tpu.memory_space<smem>>
    %c49 = arith.constant 49 : index
    %52 = memref.load %arg3[%c49] : memref<64xf32, #tpu.memory_space<smem>>
    %c50 = arith.constant 50 : index
    %53 = memref.load %arg3[%c50] : memref<64xf32, #tpu.memory_space<smem>>
    %c51 = arith.constant 51 : index
    %54 = memref.load %arg3[%c51] : memref<64xf32, #tpu.memory_space<smem>>
    %c52 = arith.constant 52 : index
    %55 = memref.load %arg3[%c52] : memref<64xf32, #tpu.memory_space<smem>>
    %c53 = arith.constant 53 : index
    %56 = memref.load %arg3[%c53] : memref<64xf32, #tpu.memory_space<smem>>
    %c54 = arith.constant 54 : index
    %57 = memref.load %arg3[%c54] : memref<64xf32, #tpu.memory_space<smem>>
    %c55 = arith.constant 55 : index
    %58 = memref.load %arg3[%c55] : memref<64xf32, #tpu.memory_space<smem>>
    %c56 = arith.constant 56 : index
    %59 = memref.load %arg3[%c56] : memref<64xf32, #tpu.memory_space<smem>>
    %c57 = arith.constant 57 : index
    %60 = memref.load %arg3[%c57] : memref<64xf32, #tpu.memory_space<smem>>
    %c58 = arith.constant 58 : index
    %61 = memref.load %arg3[%c58] : memref<64xf32, #tpu.memory_space<smem>>
    %c59 = arith.constant 59 : index
    %62 = memref.load %arg3[%c59] : memref<64xf32, #tpu.memory_space<smem>>
    %c60 = arith.constant 60 : index
    %63 = memref.load %arg3[%c60] : memref<64xf32, #tpu.memory_space<smem>>
    %c61 = arith.constant 61 : index
    %64 = memref.load %arg3[%c61] : memref<64xf32, #tpu.memory_space<smem>>
    %c62 = arith.constant 62 : index
    %65 = memref.load %arg3[%c62] : memref<64xf32, #tpu.memory_space<smem>>
    %c63 = arith.constant 63 : index
    %66 = memref.load %arg3[%c63] : memref<64xf32, #tpu.memory_space<smem>>
    %c0_1 = arith.constant 0 : index
    %67 = memref.load %arg4[%c0_1] : memref<16xf32, #tpu.memory_space<smem>>
    %c1_2 = arith.constant 1 : index
    %68 = memref.load %arg4[%c1_2] : memref<16xf32, #tpu.memory_space<smem>>
    %c2_3 = arith.constant 2 : index
    %69 = memref.load %arg4[%c2_3] : memref<16xf32, #tpu.memory_space<smem>>
    %c3_4 = arith.constant 3 : index
    %70 = memref.load %arg4[%c3_4] : memref<16xf32, #tpu.memory_space<smem>>
    %c4_5 = arith.constant 4 : index
    %71 = memref.load %arg4[%c4_5] : memref<16xf32, #tpu.memory_space<smem>>
    %c5_6 = arith.constant 5 : index
    %72 = memref.load %arg4[%c5_6] : memref<16xf32, #tpu.memory_space<smem>>
    %c6_7 = arith.constant 6 : index
    %73 = memref.load %arg4[%c6_7] : memref<16xf32, #tpu.memory_space<smem>>
    %c7_8 = arith.constant 7 : index
    %74 = memref.load %arg4[%c7_8] : memref<16xf32, #tpu.memory_space<smem>>
    %c8_9 = arith.constant 8 : index
    %75 = memref.load %arg4[%c8_9] : memref<16xf32, #tpu.memory_space<smem>>
    %c9_10 = arith.constant 9 : index
    %76 = memref.load %arg4[%c9_10] : memref<16xf32, #tpu.memory_space<smem>>
    %c10_11 = arith.constant 10 : index
    %77 = memref.load %arg4[%c10_11] : memref<16xf32, #tpu.memory_space<smem>>
    %c11_12 = arith.constant 11 : index
    %78 = memref.load %arg4[%c11_12] : memref<16xf32, #tpu.memory_space<smem>>
    %c12_13 = arith.constant 12 : index
    %79 = memref.load %arg4[%c12_13] : memref<16xf32, #tpu.memory_space<smem>>
    %c13_14 = arith.constant 13 : index
    %80 = memref.load %arg4[%c13_14] : memref<16xf32, #tpu.memory_space<smem>>
    %c14_15 = arith.constant 14 : index
    %81 = memref.load %arg4[%c14_15] : memref<16xf32, #tpu.memory_space<smem>>
    %c15_16 = arith.constant 15 : index
    %82 = memref.load %arg4[%c15_16] : memref<16xf32, #tpu.memory_space<smem>>
    %c0_17 = arith.constant 0 : index
    %83 = memref.load %arg5[%c0_17] : memref<64xf32, #tpu.memory_space<smem>>
    %c1_18 = arith.constant 1 : index
    %84 = memref.load %arg5[%c1_18] : memref<64xf32, #tpu.memory_space<smem>>
    %c2_19 = arith.constant 2 : index
    %85 = memref.load %arg5[%c2_19] : memref<64xf32, #tpu.memory_space<smem>>
    %c3_20 = arith.constant 3 : index
    %86 = memref.load %arg5[%c3_20] : memref<64xf32, #tpu.memory_space<smem>>
    %c4_21 = arith.constant 4 : index
    %87 = memref.load %arg5[%c4_21] : memref<64xf32, #tpu.memory_space<smem>>
    %c5_22 = arith.constant 5 : index
    %88 = memref.load %arg5[%c5_22] : memref<64xf32, #tpu.memory_space<smem>>
    %c6_23 = arith.constant 6 : index
    %89 = memref.load %arg5[%c6_23] : memref<64xf32, #tpu.memory_space<smem>>
    %c7_24 = arith.constant 7 : index
    %90 = memref.load %arg5[%c7_24] : memref<64xf32, #tpu.memory_space<smem>>
    %c8_25 = arith.constant 8 : index
    %91 = memref.load %arg5[%c8_25] : memref<64xf32, #tpu.memory_space<smem>>
    %c9_26 = arith.constant 9 : index
    %92 = memref.load %arg5[%c9_26] : memref<64xf32, #tpu.memory_space<smem>>
    %c10_27 = arith.constant 10 : index
    %93 = memref.load %arg5[%c10_27] : memref<64xf32, #tpu.memory_space<smem>>
    %c11_28 = arith.constant 11 : index
    %94 = memref.load %arg5[%c11_28] : memref<64xf32, #tpu.memory_space<smem>>
    %c12_29 = arith.constant 12 : index
    %95 = memref.load %arg5[%c12_29] : memref<64xf32, #tpu.memory_space<smem>>
    %c13_30 = arith.constant 13 : index
    %96 = memref.load %arg5[%c13_30] : memref<64xf32, #tpu.memory_space<smem>>
    %c14_31 = arith.constant 14 : index
    %97 = memref.load %arg5[%c14_31] : memref<64xf32, #tpu.memory_space<smem>>
    %c15_32 = arith.constant 15 : index
    %98 = memref.load %arg5[%c15_32] : memref<64xf32, #tpu.memory_space<smem>>
    %c16_33 = arith.constant 16 : index
    %99 = memref.load %arg5[%c16_33] : memref<64xf32, #tpu.memory_space<smem>>
    %c17_34 = arith.constant 17 : index
    %100 = memref.load %arg5[%c17_34] : memref<64xf32, #tpu.memory_space<smem>>
    %c18_35 = arith.constant 18 : index
    %101 = memref.load %arg5[%c18_35] : memref<64xf32, #tpu.memory_space<smem>>
    %c19_36 = arith.constant 19 : index
    %102 = memref.load %arg5[%c19_36] : memref<64xf32, #tpu.memory_space<smem>>
    %c20_37 = arith.constant 20 : index
    %103 = memref.load %arg5[%c20_37] : memref<64xf32, #tpu.memory_space<smem>>
    %c21_38 = arith.constant 21 : index
    %104 = memref.load %arg5[%c21_38] : memref<64xf32, #tpu.memory_space<smem>>
    %c22_39 = arith.constant 22 : index
    %105 = memref.load %arg5[%c22_39] : memref<64xf32, #tpu.memory_space<smem>>
    %c23_40 = arith.constant 23 : index
    %106 = memref.load %arg5[%c23_40] : memref<64xf32, #tpu.memory_space<smem>>
    %c24_41 = arith.constant 24 : index
    %107 = memref.load %arg5[%c24_41] : memref<64xf32, #tpu.memory_space<smem>>
    %c25_42 = arith.constant 25 : index
    %108 = memref.load %arg5[%c25_42] : memref<64xf32, #tpu.memory_space<smem>>
    %c26_43 = arith.constant 26 : index
    %109 = memref.load %arg5[%c26_43] : memref<64xf32, #tpu.memory_space<smem>>
    %c27_44 = arith.constant 27 : index
    %110 = memref.load %arg5[%c27_44] : memref<64xf32, #tpu.memory_space<smem>>
    %c28_45 = arith.constant 28 : index
    %111 = memref.load %arg5[%c28_45] : memref<64xf32, #tpu.memory_space<smem>>
    %c29_46 = arith.constant 29 : index
    %112 = memref.load %arg5[%c29_46] : memref<64xf32, #tpu.memory_space<smem>>
    %c30_47 = arith.constant 30 : index
    %113 = memref.load %arg5[%c30_47] : memref<64xf32, #tpu.memory_space<smem>>
    %c31_48 = arith.constant 31 : index
    %114 = memref.load %arg5[%c31_48] : memref<64xf32, #tpu.memory_space<smem>>
    %c32_49 = arith.constant 32 : index
    %115 = memref.load %arg5[%c32_49] : memref<64xf32, #tpu.memory_space<smem>>
    %c33_50 = arith.constant 33 : index
    %116 = memref.load %arg5[%c33_50] : memref<64xf32, #tpu.memory_space<smem>>
    %c34_51 = arith.constant 34 : index
    %117 = memref.load %arg5[%c34_51] : memref<64xf32, #tpu.memory_space<smem>>
    %c35_52 = arith.constant 35 : index
    %118 = memref.load %arg5[%c35_52] : memref<64xf32, #tpu.memory_space<smem>>
    %c36_53 = arith.constant 36 : index
    %119 = memref.load %arg5[%c36_53] : memref<64xf32, #tpu.memory_space<smem>>
    %c37_54 = arith.constant 37 : index
    %120 = memref.load %arg5[%c37_54] : memref<64xf32, #tpu.memory_space<smem>>
    %c38_55 = arith.constant 38 : index
    %121 = memref.load %arg5[%c38_55] : memref<64xf32, #tpu.memory_space<smem>>
    %c39_56 = arith.constant 39 : index
    %122 = memref.load %arg5[%c39_56] : memref<64xf32, #tpu.memory_space<smem>>
    %c40_57 = arith.constant 40 : index
    %123 = memref.load %arg5[%c40_57] : memref<64xf32, #tpu.memory_space<smem>>
    %c41_58 = arith.constant 41 : index
    %124 = memref.load %arg5[%c41_58] : memref<64xf32, #tpu.memory_space<smem>>
    %c42_59 = arith.constant 42 : index
    %125 = memref.load %arg5[%c42_59] : memref<64xf32, #tpu.memory_space<smem>>
    %c43_60 = arith.constant 43 : index
    %126 = memref.load %arg5[%c43_60] : memref<64xf32, #tpu.memory_space<smem>>
    %c44_61 = arith.constant 44 : index
    %127 = memref.load %arg5[%c44_61] : memref<64xf32, #tpu.memory_space<smem>>
    %c45_62 = arith.constant 45 : index
    %128 = memref.load %arg5[%c45_62] : memref<64xf32, #tpu.memory_space<smem>>
    %c46_63 = arith.constant 46 : index
    %129 = memref.load %arg5[%c46_63] : memref<64xf32, #tpu.memory_space<smem>>
    %c47_64 = arith.constant 47 : index
    %130 = memref.load %arg5[%c47_64] : memref<64xf32, #tpu.memory_space<smem>>
    %c48_65 = arith.constant 48 : index
    %131 = memref.load %arg5[%c48_65] : memref<64xf32, #tpu.memory_space<smem>>
    %c49_66 = arith.constant 49 : index
    %132 = memref.load %arg5[%c49_66] : memref<64xf32, #tpu.memory_space<smem>>
    %c50_67 = arith.constant 50 : index
    %133 = memref.load %arg5[%c50_67] : memref<64xf32, #tpu.memory_space<smem>>
    %c51_68 = arith.constant 51 : index
    %134 = memref.load %arg5[%c51_68] : memref<64xf32, #tpu.memory_space<smem>>
    %c52_69 = arith.constant 52 : index
    %135 = memref.load %arg5[%c52_69] : memref<64xf32, #tpu.memory_space<smem>>
    %c53_70 = arith.constant 53 : index
    %136 = memref.load %arg5[%c53_70] : memref<64xf32, #tpu.memory_space<smem>>
    %c54_71 = arith.constant 54 : index
    %137 = memref.load %arg5[%c54_71] : memref<64xf32, #tpu.memory_space<smem>>
    %c55_72 = arith.constant 55 : index
    %138 = memref.load %arg5[%c55_72] : memref<64xf32, #tpu.memory_space<smem>>
    %c56_73 = arith.constant 56 : index
    %139 = memref.load %arg5[%c56_73] : memref<64xf32, #tpu.memory_space<smem>>
    %c57_74 = arith.constant 57 : index
    %140 = memref.load %arg5[%c57_74] : memref<64xf32, #tpu.memory_space<smem>>
    %c58_75 = arith.constant 58 : index
    %141 = memref.load %arg5[%c58_75] : memref<64xf32, #tpu.memory_space<smem>>
    %c59_76 = arith.constant 59 : index
    %142 = memref.load %arg5[%c59_76] : memref<64xf32, #tpu.memory_space<smem>>
    %c60_77 = arith.constant 60 : index
    %143 = memref.load %arg5[%c60_77] : memref<64xf32, #tpu.memory_space<smem>>
    %c61_78 = arith.constant 61 : index
    %144 = memref.load %arg5[%c61_78] : memref<64xf32, #tpu.memory_space<smem>>
    %c62_79 = arith.constant 62 : index
    %145 = memref.load %arg5[%c62_79] : memref<64xf32, #tpu.memory_space<smem>>
    %c63_80 = arith.constant 63 : index
    %146 = memref.load %arg5[%c63_80] : memref<64xf32, #tpu.memory_space<smem>>
    %c0_81 = arith.constant 0 : index
    %147 = memref.load %arg6[%c0_81] : memref<8xf32, #tpu.memory_space<smem>>
    %c1_82 = arith.constant 1 : index
    %148 = memref.load %arg6[%c1_82] : memref<8xf32, #tpu.memory_space<smem>>
    %c2_83 = arith.constant 2 : index
    %149 = memref.load %arg6[%c2_83] : memref<8xf32, #tpu.memory_space<smem>>
    %c3_84 = arith.constant 3 : index
    %150 = memref.load %arg6[%c3_84] : memref<8xf32, #tpu.memory_space<smem>>
    %c4_85 = arith.constant 4 : index
    %151 = memref.load %arg6[%c4_85] : memref<8xf32, #tpu.memory_space<smem>>
    %c5_86 = arith.constant 5 : index
    %152 = memref.load %arg6[%c5_86] : memref<8xf32, #tpu.memory_space<smem>>
    %c6_87 = arith.constant 6 : index
    %153 = memref.load %arg6[%c6_87] : memref<8xf32, #tpu.memory_space<smem>>
    %c7_88 = arith.constant 7 : index
    %154 = memref.load %arg6[%c7_88] : memref<8xf32, #tpu.memory_space<smem>>
    %c0_89 = arith.constant 0 : index
    %155 = memref.load %arg7[%c0_89] : memref<2xf32, #tpu.memory_space<smem>>
    %c1_90 = arith.constant 1 : index
    %156 = memref.load %arg7[%c1_90] : memref<2xf32, #tpu.memory_space<smem>>
    %cst = arith.constant 0.000000e+00 : f32
    %157 = vector.broadcast %cst : f32 to vector<2x128xf32>
    %c0_91 = arith.constant 0 : index
    %c0_92 = arith.constant 0 : index
    %c0_93 = arith.constant 0 : index
    %c0_94 = arith.constant 0 : index
    %158 = vector.load %arg2[%c0_91, %c0_92, %c0_93, %c0_94] : memref<1x4x2x128xf32, #tpu.memory_space<vmem>>, vector<1x1x2x128xf32>
    %159 = vector.shape_cast %158 : vector<1x1x2x128xf32> to vector<2x128xf32>
    %c0_95 = arith.constant 0 : index
    %c1_96 = arith.constant 1 : index
    %c0_97 = arith.constant 0 : index
    %c0_98 = arith.constant 0 : index
    %160 = vector.load %arg2[%c0_95, %c1_96, %c0_97, %c0_98] : memref<1x4x2x128xf32, #tpu.memory_space<vmem>>, vector<1x1x2x128xf32>
    %161 = vector.shape_cast %160 : vector<1x1x2x128xf32> to vector<2x128xf32>
    %c0_99 = arith.constant 0 : index
    %c2_100 = arith.constant 2 : index
    %c0_101 = arith.constant 0 : index
    %c0_102 = arith.constant 0 : index
    %162 = vector.load %arg2[%c0_99, %c2_100, %c0_101, %c0_102] : memref<1x4x2x128xf32, #tpu.memory_space<vmem>>, vector<1x1x2x128xf32>
    %163 = vector.shape_cast %162 : vector<1x1x2x128xf32> to vector<2x128xf32>
    %c0_103 = arith.constant 0 : index
    %c3_104 = arith.constant 3 : index
    %c0_105 = arith.constant 0 : index
    %c0_106 = arith.constant 0 : index
    %164 = vector.load %arg2[%c0_103, %c3_104, %c0_105, %c0_106] : memref<1x4x2x128xf32, #tpu.memory_space<vmem>>, vector<1x1x2x128xf32>
    %165 = vector.shape_cast %164 : vector<1x1x2x128xf32> to vector<2x128xf32>
    %cst_107 = arith.constant 0.000000e+00 : f32
    %166 = vector.broadcast %cst_107 : f32 to vector<2x128xf32>
    %167 = vector.broadcast %3 : f32 to vector<2x128xf32>
    %168 = arith.mulf %167, %159 : vector<2x128xf32>
    %169 = vector.broadcast %11 : f32 to vector<2x128xf32>
    %170 = arith.mulf %169, %161 : vector<2x128xf32>
    %171 = arith.addf %168, %170 : vector<2x128xf32>
    %172 = vector.broadcast %19 : f32 to vector<2x128xf32>
    %173 = arith.mulf %172, %163 : vector<2x128xf32>
    %174 = arith.addf %171, %173 : vector<2x128xf32>
    %175 = vector.broadcast %27 : f32 to vector<2x128xf32>
    %176 = arith.mulf %175, %165 : vector<2x128xf32>
    %177 = arith.addf %174, %176 : vector<2x128xf32>
    %178 = vector.broadcast %67 : f32 to vector<2x128xf32>
    %179 = arith.addf %177, %178 : vector<2x128xf32>
    %cst_108 = arith.constant 0.000000e+00 : f32
    %180 = vector.broadcast %cst_108 : f32 to vector<2x128xf32>
    %181 = arith.maximumf %179, %180 : vector<2x128xf32>
    %182 = vector.broadcast %4 : f32 to vector<2x128xf32>
    %183 = arith.mulf %182, %159 : vector<2x128xf32>
    %184 = vector.broadcast %12 : f32 to vector<2x128xf32>
    %185 = arith.mulf %184, %161 : vector<2x128xf32>
    %186 = arith.addf %183, %185 : vector<2x128xf32>
    %187 = vector.broadcast %20 : f32 to vector<2x128xf32>
    %188 = arith.mulf %187, %163 : vector<2x128xf32>
    %189 = arith.addf %186, %188 : vector<2x128xf32>
    %190 = vector.broadcast %28 : f32 to vector<2x128xf32>
    %191 = arith.mulf %190, %165 : vector<2x128xf32>
    %192 = arith.addf %189, %191 : vector<2x128xf32>
    %193 = vector.broadcast %68 : f32 to vector<2x128xf32>
    %194 = arith.addf %192, %193 : vector<2x128xf32>
    %cst_109 = arith.constant 0.000000e+00 : f32
    %195 = vector.broadcast %cst_109 : f32 to vector<2x128xf32>
    %196 = arith.maximumf %194, %195 : vector<2x128xf32>
    %197 = vector.broadcast %5 : f32 to vector<2x128xf32>
    %198 = arith.mulf %197, %159 : vector<2x128xf32>
    %199 = vector.broadcast %13 : f32 to vector<2x128xf32>
    %200 = arith.mulf %199, %161 : vector<2x128xf32>
    %201 = arith.addf %198, %200 : vector<2x128xf32>
    %202 = vector.broadcast %21 : f32 to vector<2x128xf32>
    %203 = arith.mulf %202, %163 : vector<2x128xf32>
    %204 = arith.addf %201, %203 : vector<2x128xf32>
    %205 = vector.broadcast %29 : f32 to vector<2x128xf32>
    %206 = arith.mulf %205, %165 : vector<2x128xf32>
    %207 = arith.addf %204, %206 : vector<2x128xf32>
    %208 = vector.broadcast %69 : f32 to vector<2x128xf32>
    %209 = arith.addf %207, %208 : vector<2x128xf32>
    %cst_110 = arith.constant 0.000000e+00 : f32
    %210 = vector.broadcast %cst_110 : f32 to vector<2x128xf32>
    %211 = arith.maximumf %209, %210 : vector<2x128xf32>
    %212 = vector.broadcast %6 : f32 to vector<2x128xf32>
    %213 = arith.mulf %212, %159 : vector<2x128xf32>
    %214 = vector.broadcast %14 : f32 to vector<2x128xf32>
    %215 = arith.mulf %214, %161 : vector<2x128xf32>
    %216 = arith.addf %213, %215 : vector<2x128xf32>
    %217 = vector.broadcast %22 : f32 to vector<2x128xf32>
    %218 = arith.mulf %217, %163 : vector<2x128xf32>
    %219 = arith.addf %216, %218 : vector<2x128xf32>
    %220 = vector.broadcast %30 : f32 to vector<2x128xf32>
    %221 = arith.mulf %220, %165 : vector<2x128xf32>
    %222 = arith.addf %219, %221 : vector<2x128xf32>
    %223 = vector.broadcast %70 : f32 to vector<2x128xf32>
    %224 = arith.addf %222, %223 : vector<2x128xf32>
    %cst_111 = arith.constant 0.000000e+00 : f32
    %225 = vector.broadcast %cst_111 : f32 to vector<2x128xf32>
    %226 = arith.maximumf %224, %225 : vector<2x128xf32>
    %227 = vector.broadcast %7 : f32 to vector<2x128xf32>
    %228 = arith.mulf %227, %159 : vector<2x128xf32>
    %229 = vector.broadcast %15 : f32 to vector<2x128xf32>
    %230 = arith.mulf %229, %161 : vector<2x128xf32>
    %231 = arith.addf %228, %230 : vector<2x128xf32>
    %232 = vector.broadcast %23 : f32 to vector<2x128xf32>
    %233 = arith.mulf %232, %163 : vector<2x128xf32>
    %234 = arith.addf %231, %233 : vector<2x128xf32>
    %235 = vector.broadcast %31 : f32 to vector<2x128xf32>
    %236 = arith.mulf %235, %165 : vector<2x128xf32>
    %237 = arith.addf %234, %236 : vector<2x128xf32>
    %238 = vector.broadcast %71 : f32 to vector<2x128xf32>
    %239 = arith.addf %237, %238 : vector<2x128xf32>
    %cst_112 = arith.constant 0.000000e+00 : f32
    %240 = vector.broadcast %cst_112 : f32 to vector<2x128xf32>
    %241 = arith.maximumf %239, %240 : vector<2x128xf32>
    %242 = vector.broadcast %8 : f32 to vector<2x128xf32>
    %243 = arith.mulf %242, %159 : vector<2x128xf32>
    %244 = vector.broadcast %16 : f32 to vector<2x128xf32>
    %245 = arith.mulf %244, %161 : vector<2x128xf32>
    %246 = arith.addf %243, %245 : vector<2x128xf32>
    %247 = vector.broadcast %24 : f32 to vector<2x128xf32>
    %248 = arith.mulf %247, %163 : vector<2x128xf32>
    %249 = arith.addf %246, %248 : vector<2x128xf32>
    %250 = vector.broadcast %32 : f32 to vector<2x128xf32>
    %251 = arith.mulf %250, %165 : vector<2x128xf32>
    %252 = arith.addf %249, %251 : vector<2x128xf32>
    %253 = vector.broadcast %72 : f32 to vector<2x128xf32>
    %254 = arith.addf %252, %253 : vector<2x128xf32>
    %cst_113 = arith.constant 0.000000e+00 : f32
    %255 = vector.broadcast %cst_113 : f32 to vector<2x128xf32>
    %256 = arith.maximumf %254, %255 : vector<2x128xf32>
    %257 = vector.broadcast %9 : f32 to vector<2x128xf32>
    %258 = arith.mulf %257, %159 : vector<2x128xf32>
    %259 = vector.broadcast %17 : f32 to vector<2x128xf32>
    %260 = arith.mulf %259, %161 : vector<2x128xf32>
    %261 = arith.addf %258, %260 : vector<2x128xf32>
    %262 = vector.broadcast %25 : f32 to vector<2x128xf32>
    %263 = arith.mulf %262, %163 : vector<2x128xf32>
    %264 = arith.addf %261, %263 : vector<2x128xf32>
    %265 = vector.broadcast %33 : f32 to vector<2x128xf32>
    %266 = arith.mulf %265, %165 : vector<2x128xf32>
    %267 = arith.addf %264, %266 : vector<2x128xf32>
    %268 = vector.broadcast %73 : f32 to vector<2x128xf32>
    %269 = arith.addf %267, %268 : vector<2x128xf32>
    %cst_114 = arith.constant 0.000000e+00 : f32
    %270 = vector.broadcast %cst_114 : f32 to vector<2x128xf32>
    %271 = arith.maximumf %269, %270 : vector<2x128xf32>
    %272 = vector.broadcast %10 : f32 to vector<2x128xf32>
    %273 = arith.mulf %272, %159 : vector<2x128xf32>
    %274 = vector.broadcast %18 : f32 to vector<2x128xf32>
    %275 = arith.mulf %274, %161 : vector<2x128xf32>
    %276 = arith.addf %273, %275 : vector<2x128xf32>
    %277 = vector.broadcast %26 : f32 to vector<2x128xf32>
    %278 = arith.mulf %277, %163 : vector<2x128xf32>
    %279 = arith.addf %276, %278 : vector<2x128xf32>
    %280 = vector.broadcast %34 : f32 to vector<2x128xf32>
    %281 = arith.mulf %280, %165 : vector<2x128xf32>
    %282 = arith.addf %279, %281 : vector<2x128xf32>
    %283 = vector.broadcast %74 : f32 to vector<2x128xf32>
    %284 = arith.addf %282, %283 : vector<2x128xf32>
    %cst_115 = arith.constant 0.000000e+00 : f32
    %285 = vector.broadcast %cst_115 : f32 to vector<2x128xf32>
    %286 = arith.maximumf %284, %285 : vector<2x128xf32>
    %cst_116 = arith.constant 0.000000e+00 : f32
    %287 = vector.broadcast %cst_116 : f32 to vector<2x128xf32>
    %288 = vector.broadcast %83 : f32 to vector<2x128xf32>
    %289 = arith.mulf %288, %181 : vector<2x128xf32>
    %290 = vector.broadcast %87 : f32 to vector<2x128xf32>
    %291 = arith.mulf %290, %196 : vector<2x128xf32>
    %292 = arith.addf %289, %291 : vector<2x128xf32>
    %293 = vector.broadcast %91 : f32 to vector<2x128xf32>
    %294 = arith.mulf %293, %211 : vector<2x128xf32>
    %295 = arith.addf %292, %294 : vector<2x128xf32>
    %296 = vector.broadcast %95 : f32 to vector<2x128xf32>
    %297 = arith.mulf %296, %226 : vector<2x128xf32>
    %298 = arith.addf %295, %297 : vector<2x128xf32>
    %299 = vector.broadcast %99 : f32 to vector<2x128xf32>
    %300 = arith.mulf %299, %241 : vector<2x128xf32>
    %301 = arith.addf %298, %300 : vector<2x128xf32>
    %302 = vector.broadcast %103 : f32 to vector<2x128xf32>
    %303 = arith.mulf %302, %256 : vector<2x128xf32>
    %304 = arith.addf %301, %303 : vector<2x128xf32>
    %305 = vector.broadcast %107 : f32 to vector<2x128xf32>
    %306 = arith.mulf %305, %271 : vector<2x128xf32>
    %307 = arith.addf %304, %306 : vector<2x128xf32>
    %308 = vector.broadcast %111 : f32 to vector<2x128xf32>
    %309 = arith.mulf %308, %286 : vector<2x128xf32>
    %310 = arith.addf %307, %309 : vector<2x128xf32>
    %311 = vector.broadcast %147 : f32 to vector<2x128xf32>
    %312 = arith.addf %310, %311 : vector<2x128xf32>
    %313 = arith.subf %159, %312 : vector<2x128xf32>
    %314 = arith.mulf %313, %313 : vector<2x128xf32>
    %315 = arith.addf %287, %314 : vector<2x128xf32>
    %316 = vector.broadcast %84 : f32 to vector<2x128xf32>
    %317 = arith.mulf %316, %181 : vector<2x128xf32>
    %318 = vector.broadcast %88 : f32 to vector<2x128xf32>
    %319 = arith.mulf %318, %196 : vector<2x128xf32>
    %320 = arith.addf %317, %319 : vector<2x128xf32>
    %321 = vector.broadcast %92 : f32 to vector<2x128xf32>
    %322 = arith.mulf %321, %211 : vector<2x128xf32>
    %323 = arith.addf %320, %322 : vector<2x128xf32>
    %324 = vector.broadcast %96 : f32 to vector<2x128xf32>
    %325 = arith.mulf %324, %226 : vector<2x128xf32>
    %326 = arith.addf %323, %325 : vector<2x128xf32>
    %327 = vector.broadcast %100 : f32 to vector<2x128xf32>
    %328 = arith.mulf %327, %241 : vector<2x128xf32>
    %329 = arith.addf %326, %328 : vector<2x128xf32>
    %330 = vector.broadcast %104 : f32 to vector<2x128xf32>
    %331 = arith.mulf %330, %256 : vector<2x128xf32>
    %332 = arith.addf %329, %331 : vector<2x128xf32>
    %333 = vector.broadcast %108 : f32 to vector<2x128xf32>
    %334 = arith.mulf %333, %271 : vector<2x128xf32>
    %335 = arith.addf %332, %334 : vector<2x128xf32>
    %336 = vector.broadcast %112 : f32 to vector<2x128xf32>
    %337 = arith.mulf %336, %286 : vector<2x128xf32>
    %338 = arith.addf %335, %337 : vector<2x128xf32>
    %339 = vector.broadcast %148 : f32 to vector<2x128xf32>
    %340 = arith.addf %338, %339 : vector<2x128xf32>
    %341 = arith.subf %161, %340 : vector<2x128xf32>
    %342 = arith.mulf %341, %341 : vector<2x128xf32>
    %343 = arith.addf %315, %342 : vector<2x128xf32>
    %344 = vector.broadcast %85 : f32 to vector<2x128xf32>
    %345 = arith.mulf %344, %181 : vector<2x128xf32>
    %346 = vector.broadcast %89 : f32 to vector<2x128xf32>
    %347 = arith.mulf %346, %196 : vector<2x128xf32>
    %348 = arith.addf %345, %347 : vector<2x128xf32>
    %349 = vector.broadcast %93 : f32 to vector<2x128xf32>
    %350 = arith.mulf %349, %211 : vector<2x128xf32>
    %351 = arith.addf %348, %350 : vector<2x128xf32>
    %352 = vector.broadcast %97 : f32 to vector<2x128xf32>
    %353 = arith.mulf %352, %226 : vector<2x128xf32>
    %354 = arith.addf %351, %353 : vector<2x128xf32>
    %355 = vector.broadcast %101 : f32 to vector<2x128xf32>
    %356 = arith.mulf %355, %241 : vector<2x128xf32>
    %357 = arith.addf %354, %356 : vector<2x128xf32>
    %358 = vector.broadcast %105 : f32 to vector<2x128xf32>
    %359 = arith.mulf %358, %256 : vector<2x128xf32>
    %360 = arith.addf %357, %359 : vector<2x128xf32>
    %361 = vector.broadcast %109 : f32 to vector<2x128xf32>
    %362 = arith.mulf %361, %271 : vector<2x128xf32>
    %363 = arith.addf %360, %362 : vector<2x128xf32>
    %364 = vector.broadcast %113 : f32 to vector<2x128xf32>
    %365 = arith.mulf %364, %286 : vector<2x128xf32>
    %366 = arith.addf %363, %365 : vector<2x128xf32>
    %367 = vector.broadcast %149 : f32 to vector<2x128xf32>
    %368 = arith.addf %366, %367 : vector<2x128xf32>
    %369 = arith.subf %163, %368 : vector<2x128xf32>
    %370 = arith.mulf %369, %369 : vector<2x128xf32>
    %371 = arith.addf %343, %370 : vector<2x128xf32>
    %372 = vector.broadcast %86 : f32 to vector<2x128xf32>
    %373 = arith.mulf %372, %181 : vector<2x128xf32>
    %374 = vector.broadcast %90 : f32 to vector<2x128xf32>
    %375 = arith.mulf %374, %196 : vector<2x128xf32>
    %376 = arith.addf %373, %375 : vector<2x128xf32>
    %377 = vector.broadcast %94 : f32 to vector<2x128xf32>
    %378 = arith.mulf %377, %211 : vector<2x128xf32>
    %379 = arith.addf %376, %378 : vector<2x128xf32>
    %380 = vector.broadcast %98 : f32 to vector<2x128xf32>
    %381 = arith.mulf %380, %226 : vector<2x128xf32>
    %382 = arith.addf %379, %381 : vector<2x128xf32>
    %383 = vector.broadcast %102 : f32 to vector<2x128xf32>
    %384 = arith.mulf %383, %241 : vector<2x128xf32>
    %385 = arith.addf %382, %384 : vector<2x128xf32>
    %386 = vector.broadcast %106 : f32 to vector<2x128xf32>
    %387 = arith.mulf %386, %256 : vector<2x128xf32>
    %388 = arith.addf %385, %387 : vector<2x128xf32>
    %389 = vector.broadcast %110 : f32 to vector<2x128xf32>
    %390 = arith.mulf %389, %271 : vector<2x128xf32>
    %391 = arith.addf %388, %390 : vector<2x128xf32>
    %392 = vector.broadcast %114 : f32 to vector<2x128xf32>
    %393 = arith.mulf %392, %286 : vector<2x128xf32>
    %394 = arith.addf %391, %393 : vector<2x128xf32>
    %395 = vector.broadcast %150 : f32 to vector<2x128xf32>
    %396 = arith.addf %394, %395 : vector<2x128xf32>
    %397 = arith.subf %165, %396 : vector<2x128xf32>
    %398 = arith.mulf %397, %397 : vector<2x128xf32>
    %399 = arith.addf %371, %398 : vector<2x128xf32>
    %400 = vector.broadcast %155 : f32 to vector<2x128xf32>
    %401 = arith.mulf %400, %399 : vector<2x128xf32>
    %402 = arith.addf %166, %401 : vector<2x128xf32>
    %403 = vector.broadcast %35 : f32 to vector<2x128xf32>
    %404 = arith.mulf %403, %159 : vector<2x128xf32>
    %405 = vector.broadcast %43 : f32 to vector<2x128xf32>
    %406 = arith.mulf %405, %161 : vector<2x128xf32>
    %407 = arith.addf %404, %406 : vector<2x128xf32>
    %408 = vector.broadcast %51 : f32 to vector<2x128xf32>
    %409 = arith.mulf %408, %163 : vector<2x128xf32>
    %410 = arith.addf %407, %409 : vector<2x128xf32>
    %411 = vector.broadcast %59 : f32 to vector<2x128xf32>
    %412 = arith.mulf %411, %165 : vector<2x128xf32>
    %413 = arith.addf %410, %412 : vector<2x128xf32>
    %414 = vector.broadcast %75 : f32 to vector<2x128xf32>
    %415 = arith.addf %413, %414 : vector<2x128xf32>
    %cst_117 = arith.constant 0.000000e+00 : f32
    %416 = vector.broadcast %cst_117 : f32 to vector<2x128xf32>
    %417 = arith.maximumf %415, %416 : vector<2x128xf32>
    %418 = vector.broadcast %36 : f32 to vector<2x128xf32>
    %419 = arith.mulf %418, %159 : vector<2x128xf32>
    %420 = vector.broadcast %44 : f32 to vector<2x128xf32>
    %421 = arith.mulf %420, %161 : vector<2x128xf32>
    %422 = arith.addf %419, %421 : vector<2x128xf32>
    %423 = vector.broadcast %52 : f32 to vector<2x128xf32>
    %424 = arith.mulf %423, %163 : vector<2x128xf32>
    %425 = arith.addf %422, %424 : vector<2x128xf32>
    %426 = vector.broadcast %60 : f32 to vector<2x128xf32>
    %427 = arith.mulf %426, %165 : vector<2x128xf32>
    %428 = arith.addf %425, %427 : vector<2x128xf32>
    %429 = vector.broadcast %76 : f32 to vector<2x128xf32>
    %430 = arith.addf %428, %429 : vector<2x128xf32>
    %cst_118 = arith.constant 0.000000e+00 : f32
    %431 = vector.broadcast %cst_118 : f32 to vector<2x128xf32>
    %432 = arith.maximumf %430, %431 : vector<2x128xf32>
    %433 = vector.broadcast %37 : f32 to vector<2x128xf32>
    %434 = arith.mulf %433, %159 : vector<2x128xf32>
    %435 = vector.broadcast %45 : f32 to vector<2x128xf32>
    %436 = arith.mulf %435, %161 : vector<2x128xf32>
    %437 = arith.addf %434, %436 : vector<2x128xf32>
    %438 = vector.broadcast %53 : f32 to vector<2x128xf32>
    %439 = arith.mulf %438, %163 : vector<2x128xf32>
    %440 = arith.addf %437, %439 : vector<2x128xf32>
    %441 = vector.broadcast %61 : f32 to vector<2x128xf32>
    %442 = arith.mulf %441, %165 : vector<2x128xf32>
    %443 = arith.addf %440, %442 : vector<2x128xf32>
    %444 = vector.broadcast %77 : f32 to vector<2x128xf32>
    %445 = arith.addf %443, %444 : vector<2x128xf32>
    %cst_119 = arith.constant 0.000000e+00 : f32
    %446 = vector.broadcast %cst_119 : f32 to vector<2x128xf32>
    %447 = arith.maximumf %445, %446 : vector<2x128xf32>
    %448 = vector.broadcast %38 : f32 to vector<2x128xf32>
    %449 = arith.mulf %448, %159 : vector<2x128xf32>
    %450 = vector.broadcast %46 : f32 to vector<2x128xf32>
    %451 = arith.mulf %450, %161 : vector<2x128xf32>
    %452 = arith.addf %449, %451 : vector<2x128xf32>
    %453 = vector.broadcast %54 : f32 to vector<2x128xf32>
    %454 = arith.mulf %453, %163 : vector<2x128xf32>
    %455 = arith.addf %452, %454 : vector<2x128xf32>
    %456 = vector.broadcast %62 : f32 to vector<2x128xf32>
    %457 = arith.mulf %456, %165 : vector<2x128xf32>
    %458 = arith.addf %455, %457 : vector<2x128xf32>
    %459 = vector.broadcast %78 : f32 to vector<2x128xf32>
    %460 = arith.addf %458, %459 : vector<2x128xf32>
    %cst_120 = arith.constant 0.000000e+00 : f32
    %461 = vector.broadcast %cst_120 : f32 to vector<2x128xf32>
    %462 = arith.maximumf %460, %461 : vector<2x128xf32>
    %463 = vector.broadcast %39 : f32 to vector<2x128xf32>
    %464 = arith.mulf %463, %159 : vector<2x128xf32>
    %465 = vector.broadcast %47 : f32 to vector<2x128xf32>
    %466 = arith.mulf %465, %161 : vector<2x128xf32>
    %467 = arith.addf %464, %466 : vector<2x128xf32>
    %468 = vector.broadcast %55 : f32 to vector<2x128xf32>
    %469 = arith.mulf %468, %163 : vector<2x128xf32>
    %470 = arith.addf %467, %469 : vector<2x128xf32>
    %471 = vector.broadcast %63 : f32 to vector<2x128xf32>
    %472 = arith.mulf %471, %165 : vector<2x128xf32>
    %473 = arith.addf %470, %472 : vector<2x128xf32>
    %474 = vector.broadcast %79 : f32 to vector<2x128xf32>
    %475 = arith.addf %473, %474 : vector<2x128xf32>
    %cst_121 = arith.constant 0.000000e+00 : f32
    %476 = vector.broadcast %cst_121 : f32 to vector<2x128xf32>
    %477 = arith.maximumf %475, %476 : vector<2x128xf32>
    %478 = vector.broadcast %40 : f32 to vector<2x128xf32>
    %479 = arith.mulf %478, %159 : vector<2x128xf32>
    %480 = vector.broadcast %48 : f32 to vector<2x128xf32>
    %481 = arith.mulf %480, %161 : vector<2x128xf32>
    %482 = arith.addf %479, %481 : vector<2x128xf32>
    %483 = vector.broadcast %56 : f32 to vector<2x128xf32>
    %484 = arith.mulf %483, %163 : vector<2x128xf32>
    %485 = arith.addf %482, %484 : vector<2x128xf32>
    %486 = vector.broadcast %64 : f32 to vector<2x128xf32>
    %487 = arith.mulf %486, %165 : vector<2x128xf32>
    %488 = arith.addf %485, %487 : vector<2x128xf32>
    %489 = vector.broadcast %80 : f32 to vector<2x128xf32>
    %490 = arith.addf %488, %489 : vector<2x128xf32>
    %cst_122 = arith.constant 0.000000e+00 : f32
    %491 = vector.broadcast %cst_122 : f32 to vector<2x128xf32>
    %492 = arith.maximumf %490, %491 : vector<2x128xf32>
    %493 = vector.broadcast %41 : f32 to vector<2x128xf32>
    %494 = arith.mulf %493, %159 : vector<2x128xf32>
    %495 = vector.broadcast %49 : f32 to vector<2x128xf32>
    %496 = arith.mulf %495, %161 : vector<2x128xf32>
    %497 = arith.addf %494, %496 : vector<2x128xf32>
    %498 = vector.broadcast %57 : f32 to vector<2x128xf32>
    %499 = arith.mulf %498, %163 : vector<2x128xf32>
    %500 = arith.addf %497, %499 : vector<2x128xf32>
    %501 = vector.broadcast %65 : f32 to vector<2x128xf32>
    %502 = arith.mulf %501, %165 : vector<2x128xf32>
    %503 = arith.addf %500, %502 : vector<2x128xf32>
    %504 = vector.broadcast %81 : f32 to vector<2x128xf32>
    %505 = arith.addf %503, %504 : vector<2x128xf32>
    %cst_123 = arith.constant 0.000000e+00 : f32
    %506 = vector.broadcast %cst_123 : f32 to vector<2x128xf32>
    %507 = arith.maximumf %505, %506 : vector<2x128xf32>
    %508 = vector.broadcast %42 : f32 to vector<2x128xf32>
    %509 = arith.mulf %508, %159 : vector<2x128xf32>
    %510 = vector.broadcast %50 : f32 to vector<2x128xf32>
    %511 = arith.mulf %510, %161 : vector<2x128xf32>
    %512 = arith.addf %509, %511 : vector<2x128xf32>
    %513 = vector.broadcast %58 : f32 to vector<2x128xf32>
    %514 = arith.mulf %513, %163 : vector<2x128xf32>
    %515 = arith.addf %512, %514 : vector<2x128xf32>
    %516 = vector.broadcast %66 : f32 to vector<2x128xf32>
    %517 = arith.mulf %516, %165 : vector<2x128xf32>
    %518 = arith.addf %515, %517 : vector<2x128xf32>
    %519 = vector.broadcast %82 : f32 to vector<2x128xf32>
    %520 = arith.addf %518, %519 : vector<2x128xf32>
    %cst_124 = arith.constant 0.000000e+00 : f32
    %521 = vector.broadcast %cst_124 : f32 to vector<2x128xf32>
    %522 = arith.maximumf %520, %521 : vector<2x128xf32>
    %cst_125 = arith.constant 0.000000e+00 : f32
    %523 = vector.broadcast %cst_125 : f32 to vector<2x128xf32>
    %524 = vector.broadcast %115 : f32 to vector<2x128xf32>
    %525 = arith.mulf %524, %417 : vector<2x128xf32>
    %526 = vector.broadcast %119 : f32 to vector<2x128xf32>
    %527 = arith.mulf %526, %432 : vector<2x128xf32>
    %528 = arith.addf %525, %527 : vector<2x128xf32>
    %529 = vector.broadcast %123 : f32 to vector<2x128xf32>
    %530 = arith.mulf %529, %447 : vector<2x128xf32>
    %531 = arith.addf %528, %530 : vector<2x128xf32>
    %532 = vector.broadcast %127 : f32 to vector<2x128xf32>
    %533 = arith.mulf %532, %462 : vector<2x128xf32>
    %534 = arith.addf %531, %533 : vector<2x128xf32>
    %535 = vector.broadcast %131 : f32 to vector<2x128xf32>
    %536 = arith.mulf %535, %477 : vector<2x128xf32>
    %537 = arith.addf %534, %536 : vector<2x128xf32>
    %538 = vector.broadcast %135 : f32 to vector<2x128xf32>
    %539 = arith.mulf %538, %492 : vector<2x128xf32>
    %540 = arith.addf %537, %539 : vector<2x128xf32>
    %541 = vector.broadcast %139 : f32 to vector<2x128xf32>
    %542 = arith.mulf %541, %507 : vector<2x128xf32>
    %543 = arith.addf %540, %542 : vector<2x128xf32>
    %544 = vector.broadcast %143 : f32 to vector<2x128xf32>
    %545 = arith.mulf %544, %522 : vector<2x128xf32>
    %546 = arith.addf %543, %545 : vector<2x128xf32>
    %547 = vector.broadcast %151 : f32 to vector<2x128xf32>
    %548 = arith.addf %546, %547 : vector<2x128xf32>
    %549 = arith.subf %159, %548 : vector<2x128xf32>
    %550 = arith.mulf %549, %549 : vector<2x128xf32>
    %551 = arith.addf %523, %550 : vector<2x128xf32>
    %552 = vector.broadcast %116 : f32 to vector<2x128xf32>
    %553 = arith.mulf %552, %417 : vector<2x128xf32>
    %554 = vector.broadcast %120 : f32 to vector<2x128xf32>
    %555 = arith.mulf %554, %432 : vector<2x128xf32>
    %556 = arith.addf %553, %555 : vector<2x128xf32>
    %557 = vector.broadcast %124 : f32 to vector<2x128xf32>
    %558 = arith.mulf %557, %447 : vector<2x128xf32>
    %559 = arith.addf %556, %558 : vector<2x128xf32>
    %560 = vector.broadcast %128 : f32 to vector<2x128xf32>
    %561 = arith.mulf %560, %462 : vector<2x128xf32>
    %562 = arith.addf %559, %561 : vector<2x128xf32>
    %563 = vector.broadcast %132 : f32 to vector<2x128xf32>
    %564 = arith.mulf %563, %477 : vector<2x128xf32>
    %565 = arith.addf %562, %564 : vector<2x128xf32>
    %566 = vector.broadcast %136 : f32 to vector<2x128xf32>
    %567 = arith.mulf %566, %492 : vector<2x128xf32>
    %568 = arith.addf %565, %567 : vector<2x128xf32>
    %569 = vector.broadcast %140 : f32 to vector<2x128xf32>
    %570 = arith.mulf %569, %507 : vector<2x128xf32>
    %571 = arith.addf %568, %570 : vector<2x128xf32>
    %572 = vector.broadcast %144 : f32 to vector<2x128xf32>
    %573 = arith.mulf %572, %522 : vector<2x128xf32>
    %574 = arith.addf %571, %573 : vector<2x128xf32>
    %575 = vector.broadcast %152 : f32 to vector<2x128xf32>
    %576 = arith.addf %574, %575 : vector<2x128xf32>
    %577 = arith.subf %161, %576 : vector<2x128xf32>
    %578 = arith.mulf %577, %577 : vector<2x128xf32>
    %579 = arith.addf %551, %578 : vector<2x128xf32>
    %580 = vector.broadcast %117 : f32 to vector<2x128xf32>
    %581 = arith.mulf %580, %417 : vector<2x128xf32>
    %582 = vector.broadcast %121 : f32 to vector<2x128xf32>
    %583 = arith.mulf %582, %432 : vector<2x128xf32>
    %584 = arith.addf %581, %583 : vector<2x128xf32>
    %585 = vector.broadcast %125 : f32 to vector<2x128xf32>
    %586 = arith.mulf %585, %447 : vector<2x128xf32>
    %587 = arith.addf %584, %586 : vector<2x128xf32>
    %588 = vector.broadcast %129 : f32 to vector<2x128xf32>
    %589 = arith.mulf %588, %462 : vector<2x128xf32>
    %590 = arith.addf %587, %589 : vector<2x128xf32>
    %591 = vector.broadcast %133 : f32 to vector<2x128xf32>
    %592 = arith.mulf %591, %477 : vector<2x128xf32>
    %593 = arith.addf %590, %592 : vector<2x128xf32>
    %594 = vector.broadcast %137 : f32 to vector<2x128xf32>
    %595 = arith.mulf %594, %492 : vector<2x128xf32>
    %596 = arith.addf %593, %595 : vector<2x128xf32>
    %597 = vector.broadcast %141 : f32 to vector<2x128xf32>
    %598 = arith.mulf %597, %507 : vector<2x128xf32>
    %599 = arith.addf %596, %598 : vector<2x128xf32>
    %600 = vector.broadcast %145 : f32 to vector<2x128xf32>
    %601 = arith.mulf %600, %522 : vector<2x128xf32>
    %602 = arith.addf %599, %601 : vector<2x128xf32>
    %603 = vector.broadcast %153 : f32 to vector<2x128xf32>
    %604 = arith.addf %602, %603 : vector<2x128xf32>
    %605 = arith.subf %163, %604 : vector<2x128xf32>
    %606 = arith.mulf %605, %605 : vector<2x128xf32>
    %607 = arith.addf %579, %606 : vector<2x128xf32>
    %608 = vector.broadcast %118 : f32 to vector<2x128xf32>
    %609 = arith.mulf %608, %417 : vector<2x128xf32>
    %610 = vector.broadcast %122 : f32 to vector<2x128xf32>
    %611 = arith.mulf %610, %432 : vector<2x128xf32>
    %612 = arith.addf %609, %611 : vector<2x128xf32>
    %613 = vector.broadcast %126 : f32 to vector<2x128xf32>
    %614 = arith.mulf %613, %447 : vector<2x128xf32>
    %615 = arith.addf %612, %614 : vector<2x128xf32>
    %616 = vector.broadcast %130 : f32 to vector<2x128xf32>
    %617 = arith.mulf %616, %462 : vector<2x128xf32>
    %618 = arith.addf %615, %617 : vector<2x128xf32>
    %619 = vector.broadcast %134 : f32 to vector<2x128xf32>
    %620 = arith.mulf %619, %477 : vector<2x128xf32>
    %621 = arith.addf %618, %620 : vector<2x128xf32>
    %622 = vector.broadcast %138 : f32 to vector<2x128xf32>
    %623 = arith.mulf %622, %492 : vector<2x128xf32>
    %624 = arith.addf %621, %623 : vector<2x128xf32>
    %625 = vector.broadcast %142 : f32 to vector<2x128xf32>
    %626 = arith.mulf %625, %507 : vector<2x128xf32>
    %627 = arith.addf %624, %626 : vector<2x128xf32>
    %628 = vector.broadcast %146 : f32 to vector<2x128xf32>
    %629 = arith.mulf %628, %522 : vector<2x128xf32>
    %630 = arith.addf %627, %629 : vector<2x128xf32>
    %631 = vector.broadcast %154 : f32 to vector<2x128xf32>
    %632 = arith.addf %630, %631 : vector<2x128xf32>
    %633 = arith.subf %165, %632 : vector<2x128xf32>
    %634 = arith.mulf %633, %633 : vector<2x128xf32>
    %635 = arith.addf %607, %634 : vector<2x128xf32>
    %636 = vector.broadcast %156 : f32 to vector<2x128xf32>
    %637 = arith.mulf %636, %635 : vector<2x128xf32>
    %638 = arith.addf %402, %637 : vector<2x128xf32>
    %639 = arith.addf %157, %638 : vector<2x128xf32>
    %c0_126 = arith.constant 0 : index
    %c0_127 = arith.constant 0 : index
    %c0_128 = arith.constant 0 : index
    %640 = vector.load %arg8[%c0_126, %c0_127, %c0_128] : memref<1x2x128xf32, #tpu.memory_space<vmem>>, vector<1x2x128xf32>
    %641 = vector.shape_cast %639 : vector<2x128xf32> to vector<1x2x128xf32>
    %642 = arith.addf %640, %641 : vector<1x2x128xf32>
    %c0_129 = arith.constant 0 : index
    %c0_130 = arith.constant 0 : index
    %c0_131 = arith.constant 0 : index
    %643 = vector.load %arg8[%c0_129, %c0_130, %c0_131] : memref<1x2x128xf32, #tpu.memory_space<vmem>>, vector<1x2x128xf32>
    tpu.vector_store %arg8[%c0_129, %c0_130, %c0_131], %642 {strides = array<i32>} : memref<1x2x128xf32, #tpu.memory_space<vmem>>, vector<1x2x128xf32>,
    return
  }
  func.func @transform_0(%arg0: i32, %arg1: i32) -> (i32, i32, i32, i32) {
    %c0_i32 = arith.constant 0 : i32
    %c0_i32_0 = arith.constant 0 : i32
    %c0_i32_1 = arith.constant 0 : i32
    return %arg0, %c0_i32, %arg1, %c0_i32_0 : i32, i32, i32, i32
  }
  func.func @transform_1(%arg0: i32, %arg1: i32) -> i32 {
    %c0_i32 = arith.constant 0 : i32
    %c0_i32_0 = arith.constant 0 : i32
    return %c0_i32 : i32
  }
  func.func @transform_2(%arg0: i32, %arg1: i32) -> i32 {
    %c0_i32 = arith.constant 0 : i32
    %c0_i32_0 = arith.constant 0 : i32
    return %c0_i32 : i32
  }
  func.func @transform_3(%arg0: i32, %arg1: i32) -> i32 {
    %c0_i32 = arith.constant 0 : i32
    %c0_i32_0 = arith.constant 0 : i32
    return %c0_i32 : i32
  }
  func.func @transform_4(%arg0: i32, %arg1: i32) -> i32 {
    %c0_i32 = arith.constant 0 : i32
    %c0_i32_0 = arith.constant 0 : i32
    return %c0_i32 : i32
  }
  func.func @transform_5(%arg0: i32, %arg1: i32) -> i32 {
    %c0_i32 = arith.constant 0 : i32
    %c0_i32_0 = arith.constant 0 : i32
    return %c0_i32 : i32
  }
  func.func @transform_6(%arg0: i32, %arg1: i32) -> (i32, i32, i32) {
    %c0_i32 = arith.constant 0 : i32
    %c0_i32_0 = arith.constant 0 : i32
    %c0_i32_1 = arith.constant 0 : i32
    return %arg0, %c0_i32, %c0_i32_0 : i32, i32, i32
  }
}

</mosaic_0001>

<llo_original>
// kernel: tpu_custom_call.1
$region0: #{tpu_custom_call.1}
  #allocation0 [shape = 'u32[]', space=smem, size = 0x4, offset = 0x4, fixed_abs, tag = 'smem constant byte address 0x4 - core index']
  #allocation1 [shape = 'u32[144,128]{1,0:T(1,128)}', space=vmem, size = 0x12000, scoped, tag = 'internal scratch']
  %s0 = inlined_call_operand.hbm [shape: f32[2,4,2,128], index: 0, kind: input, shape index: {}]
  %s1 = inlined_call_operand.vmem [shape: f32[64], index: 1, kind: input, shape index: {}]
  %s2 = inlined_call_operand.vmem [shape: f32[16], index: 2, kind: input, shape index: {}]
  %s3 = inlined_call_operand.vmem [shape: f32[64], index: 3, kind: input, shape index: {}]
  %s4 = inlined_call_operand.vmem [shape: f32[8], index: 4, kind: input, shape index: {}]
  %s5 = inlined_call_operand.vmem [shape: f32[2], index: 5, kind: input, shape index: {}]
  %s6 = inlined_call_operand.hbm [shape: f32[2,2,128], index: 6, kind: output, shape index: {}]
  %s7 = sld [smem:[#allocation0]]
  $region85: #{tpu_custom_call.1} parent=0
    _
  %s9 = ssub.s32 1, %s7
  %s10 = scalar_select 0, %s9, %s7
  $region1: #{tpu_custom_call.1} parent=0
    #allocation2 [shape = 'u8[8192]{0}', space=vmem, size = 0x2000, scoped, tag = 'input window, operand 0']
    #allocation3 [shape = 's32[2]{0}', space=sflag, size = 0x8, scoped, tag = 'scoped memory for tpu_custom_call.1']
    #allocation4 [shape = 's32[2]{0}', space=sflag, size = 0x8, scoped, tag = 'scoped memory for tpu_custom_call.1']
    #allocation5 [shape = 's32[2]{0}', space=sflag, size = 0x8, scoped, tag = 'scoped memory for tpu_custom_call.1']
    #allocation6 [shape = 'u8[512]{0}', space=smem, size = 0x200, scoped, tag = 'input window, operand 1, single buffered']
    #allocation7 [shape = 'u8[512]{0}', space=smem, size = 0x200, scoped, tag = 'input window, operand 2, single buffered']
    #allocation8 [shape = 's32[1]{0}', space=sflag, size = 0x4, scoped, tag = 'scoped memory for tpu_custom_call.1']
    #allocation9 [shape = 'u8[512]{0}', space=smem, size = 0x200, scoped, tag = 'input window, operand 3, single buffered']
    #allocation10 [shape = 'u8[512]{0}', space=smem, size = 0x200, scoped, tag = 'input window, operand 4, single buffered']
    #allocation11 [shape = 's32[1]{0}', space=sflag, size = 0x4, scoped, tag = 'scoped memory for tpu_custom_call.1']
    #allocation12 [shape = 'u8[512]{0}', space=smem, size = 0x200, scoped, tag = 'input window, operand 5, single buffered']
    #allocation13 [shape = 'u8[2048]{0}', space=vmem, size = 0x800, scoped, tag = 'output window, operand 0']
    %11 = vsyncpa [#allocation3], 0
    %s12 = scalar_lea.sflag [#allocation3], 1
    %13 = vsyncpa %s12, 0
    %14 = vsyncpa [#allocation5], 0
    %15 = vsyncpa [#allocation8], 0
    %16 = vsyncpa [#allocation11], 0
    %17 = vsyncpa [#allocation4], 0
    %s18 = scalar_lea.sflag [#allocation4], 1
    %19 = vsyncpa %s18, 0
    loop: start=0, step=1, limit=4
    $region2: #{tpu_custom_call.1} parent=1 // loop_pre_header
      _
    $region3: #{tpu_custom_call.1} parent=1 // loop_header
      %s21 = sphi 0, %s25
      %p22 = scmp.ge.s32.totalorder %s21, 4
      %s28 = sphi 0, %s40
      %s29 = sphi 0, %s36
      %s30 = sphi 0, %s28
      %s31 = sphi 0, %s29
      %s32 = sphi 0, %s30
      %s33 = sphi 0, %s31
      %s45 = sphi 0, %s47
      %s48 = sphi 0, %s45
      %s49 = sphi 0, %s48
      %s65 = sphi 0, %s49
      %s69 = sphi 0, %s69
      %s71 = sphi 0, %s69
      %s72 = sphi 0, %s71
      %s86 = sphi 0, %s72
      %s90 = sphi 0, %s90
      %s92 = sphi 0, %s90
      %s93 = sphi 0, %s92
      %s107 = sphi 0, %s93
      %s111 = sphi 0, %s111
      %s113 = sphi 0, %s111
      %s114 = sphi 0, %s113
      %s128 = sphi 0, %s114
      %s132 = sphi 0, %s132
      %s134 = sphi 0, %s132
      %s135 = sphi 0, %s134
      %s149 = sphi 0, %s135
      %s153 = sphi 0, %s153
      %s155 = sphi 0, %s153
      %s156 = sphi 0, %s155
      %s170 = sphi 0, %s156
      %s176 = sphi 0, %s178
      %s179 = sphi 0, %s176
      %s180 = sphi 0, %s179
      %s196 = sphi 0, %s180
    $region4: #{tpu_custom_call.1} parent=1 // loop_header_branch
      %24 = sbr.rel (%p22) target = $region8
    $region5: #{tpu_custom_call.1} parent=1 // loop_body
      %s26 = ssub.s32 %s21, 1
      %s27 = ssub.s32 %s21, 2
      %s34 = sadd.s32 1, %s29
      %p35 = scmp.ge.s32.totalorder %s34, 1
      %s36 = scalar_select %p35, 0, %s34
      %s37 = sadd.s32 1, %s28
      %s38 = scalar_select %p35, %s37, %s28
      %p39 = scmp.ge.s32.totalorder %s38, 2
      %s40 = scalar_select %p39, 0, %s38
      %s41 = ssub.s32 %s28, %s40
      %s42 = ssub.s32 %s29, %s36
      %s43 = sor.u32 %s41, %s42
      %p44 = scmp.eq.s32.totalorder %s43, 0
      %s46 = sadd.s32 %s45, 1
      %s47 = scalar_select %p44, %s45, %s46
      %p50 = pneg %p44
      %p51 = scmp.eq.s32.totalorder %s21, 1
      %p52 = por %p50, %p51
      %p53 = scmp.ne.s32.totalorder %s45, %s48
      %p54 = scmp.eq.s32.totalorder %s21, 0
      %p55 = por %p53, %p54
      %p56 = scmp.ne.s32.totalorder %s45, %s48
      %p57 = scmp.eq.s32.totalorder %s26, 1
      %p58 = por %p56, %p57
      %p59 = scmp.ne.s32.totalorder %s48, %s49
      %p60 = scmp.eq.s32.totalorder %s26, 0
      %p61 = por %p59, %p60
      %p62 = scmp.ne.s32.totalorder %s48, %s49
      %p63 = scmp.eq.s32.totalorder %s27, 1
      %p64 = por %p62, %p63
      %p66 = scmp.ne.s32.totalorder %s49, %s65
      %p67 = scmp.eq.s32.totalorder %s27, 0
      %p68 = por %p66, %p67
      %s70 = sadd.s32 %s69, 1
      %p73 = scmp.eq.s32.totalorder %s21, 1
      %p74 = scmp.ne.s32.totalorder %s69, %s71
      %p75 = scmp.eq.s32.totalorder %s21, 0
      %p76 = por %p74, %p75
      %p77 = scmp.ne.s32.totalorder %s69, %s71
      %p78 = scmp.eq.s32.totalorder %s26, 1
      %p79 = por %p77, %p78
      %p80 = scmp.ne.s32.totalorder %s71, %s72
      %p81 = scmp.eq.s32.totalorder %s26, 0
      %p82 = por %p80, %p81
      %p83 = scmp.ne.s32.totalorder %s71, %s72
      %p84 = scmp.eq.s32.totalorder %s27, 1
      %p85 = por %p83, %p84
      %p87 = scmp.ne.s32.totalorder %s72, %s86
      %p88 = scmp.eq.s32.totalorder %s27, 0
      %p89 = por %p87, %p88
      %s91 = sadd.s32 %s90, 1
      %p94 = scmp.eq.s32.totalorder %s21, 1
      %p95 = scmp.ne.s32.totalorder %s90, %s92
      %p96 = scmp.eq.s32.totalorder %s21, 0
      %p97 = por %p95, %p96
      %p98 = scmp.ne.s32.totalorder %s90, %s92
      %p99 = scmp.eq.s32.totalorder %s26, 1
      %p100 = por %p98, %p99
      %p101 = scmp.ne.s32.totalorder %s92, %s93
      %p102 = scmp.eq.s32.totalorder %s26, 0
      %p103 = por %p101, %p102
      %p104 = scmp.ne.s32.totalorder %s92, %s93
      %p105 = scmp.eq.s32.totalorder %s27, 1
      %p106 = por %p104, %p105
      %p108 = scmp.ne.s32.totalorder %s93, %s107
      %p109 = scmp.eq.s32.totalorder %s27, 0
      %p110 = por %p108, %p109
      %s112 = sadd.s32 %s111, 1
      %p115 = scmp.eq.s32.totalorder %s21, 1
      %p116 = scmp.ne.s32.totalorder %s111, %s113
      %p117 = scmp.eq.s32.totalorder %s21, 0
      %p118 = por %p116, %p117
      %p119 = scmp.ne.s32.totalorder %s111, %s113
      %p120 = scmp.eq.s32.totalorder %s26, 1
      %p121 = por %p119, %p120
      %p122 = scmp.ne.s32.totalorder %s113, %s114
      %p123 = scmp.eq.s32.totalorder %s26, 0
      %p124 = por %p122, %p123
      %p125 = scmp.ne.s32.totalorder %s113, %s114
      %p126 = scmp.eq.s32.totalorder %s27, 1
      %p127 = por %p125, %p126
      %p129 = scmp.ne.s32.totalorder %s114, %s128
      %p130 = scmp.eq.s32.totalorder %s27, 0
      %p131 = por %p129, %p130
      %s133 = sadd.s32 %s132, 1
      %p136 = scmp.eq.s32.totalorder %s21, 1
      %p137 = scmp.ne.s32.totalorder %s132, %s134
      %p138 = scmp.eq.s32.totalorder %s21, 0
      %p139 = por %p137, %p138
      %p140 = scmp.ne.s32.totalorder %s132, %s134
      %p141 = scmp.eq.s32.totalorder %s26, 1
      %p142 = por %p140, %p141
      %p143 = scmp.ne.s32.totalorder %s134, %s135
      %p144 = scmp.eq.s32.totalorder %s26, 0
      %p145 = por %p143, %p144
      %p146 = scmp.ne.s32.totalorder %s134, %s135
      %p147 = scmp.eq.s32.totalorder %s27, 1
      %p148 = por %p146, %p147
      %p150 = scmp.ne.s32.totalorder %s135, %s149
      %p151 = scmp.eq.s32.totalorder %s27, 0
      %p152 = por %p150, %p151
      %s154 = sadd.s32 %s153, 1
      %p157 = scmp.eq.s32.totalorder %s21, 1
      %p158 = scmp.ne.s32.totalorder %s153, %s155
      %p159 = scmp.eq.s32.totalorder %s21, 0
      %p160 = por %p158, %p159
      %p161 = scmp.ne.s32.totalorder %s153, %s155
      %p162 = scmp.eq.s32.totalorder %s26, 1
      %p163 = por %p161, %p162
      %p164 = scmp.ne.s32.totalorder %s155, %s156
      %p165 = scmp.eq.s32.totalorder %s26, 0
      %p166 = por %p164, %p165
      %p167 = scmp.ne.s32.totalorder %s155, %s156
      %p168 = scmp.eq.s32.totalorder %s27, 1
      %p169 = por %p167, %p168
      %p171 = scmp.ne.s32.totalorder %s156, %s170
      %p172 = scmp.eq.s32.totalorder %s27, 0
      %p173 = por %p171, %p172
      %s174 = ssub.s32 %s28, %s40
      %p175 = scmp.eq.s32.totalorder %s174, 0
      %s177 = sadd.s32 %s176, 1
      %s178 = scalar_select %p175, %s176, %s177
      %p181 = pneg %p175
      %p182 = scmp.eq.s32.totalorder %s21, 1
      %p183 = por %p181, %p182
      %p184 = scmp.ne.s32.totalorder %s176, %s179
      %p185 = scmp.eq.s32.totalorder %s21, 0
      %p186 = por %p184, %p185
      %p187 = scmp.ne.s32.totalorder %s176, %s179
      %p188 = scmp.eq.s32.totalorder %s26, 1
      %p189 = por %p187, %p188
      %p190 = scmp.ne.s32.totalorder %s179, %s180
      %p191 = scmp.eq.s32.totalorder %s26, 0
      %p192 = por %p190, %p191
      %p193 = scmp.ne.s32.totalorder %s179, %s180
      %p194 = scmp.eq.s32.totalorder %s27, 1
      %p195 = por %p193, %p194
      %p197 = scmp.ne.s32.totalorder %s180, %s196
      %p198 = scmp.eq.s32.totalorder %s27, 0
      %p199 = por %p197, %p198
      %p200 = scmp.le.s32.totalorder 1, %s21
      %p201 = scmp.lt.s32.totalorder %s21, 3
      %p202 = pnand %p200, %p201
      %p203 = pneg %p202
      // Predicated region
      $region9: #{tpu_custom_call.1} parent=5 // pred_check
        _
      $region10: #{tpu_custom_call.1} parent=5 // pred_check_branch
        %205 = sbr.rel (%p202) target = $region12
      $region11: #{tpu_custom_call.1} parent=5 // pred_region
        %s206 = ssub.s32 %s21, 1
        // Predicated region
        $region13: #{tpu_custom_call.1} parent=11 // pred_check
          %p207 = pneg %p82
        $region14: #{tpu_custom_call.1} parent=11 // pred_check_branch
          %209 = sbr.rel (%p207) target = $region16
        $region15: #{tpu_custom_call.1} parent=11 // pred_region
          %s211 = ssub.s32 16, 16
          %212 = vsyncadd [#allocation5], %s211
          %s214 = sshll.u32 %s1, 4
          %s215 = int_to_ptr.vmem [resolvable:$true] %s214
          %217 = dma.vmem_to_smem %s215, 16, [#allocation6], [#allocation5]
        $region16: #{tpu_custom_call.1} parent=11 // pred_fallthru
          _
        // Predicated region
        $region17: #{tpu_custom_call.1} parent=11 // pred_check
          %p218 = pneg %p103
        $region18: #{tpu_custom_call.1} parent=11 // pred_check_branch
          %220 = sbr.rel (%p218) target = $region20
        $region19: #{tpu_custom_call.1} parent=11 // pred_region
          %s222 = ssub.s32 16, 16
          %223 = vsyncadd [#allocation8], %s222
          %s225 = sshll.u32 %s2, 4
          %s226 = int_to_ptr.vmem [resolvable:$true] %s225
          %228 = dma.vmem_to_smem %s226, 16, [#allocation7], [#allocation8]
        $region20: #{tpu_custom_call.1} parent=11 // pred_fallthru
          _
        // Predicated region
        $region21: #{tpu_custom_call.1} parent=11 // pred_check
          %p229 = pneg %p124
        $region22: #{tpu_custom_call.1} parent=11 // pred_check_branch
          %231 = sbr.rel (%p229) target = $region24
        $region23: #{tpu_custom_call.1} parent=11 // pred_region
          %s233 = ssub.s32 16, 16
          %234 = vsyncadd [#allocation8], %s233
          %s236 = sshll.u32 %s3, 4
          %s237 = int_to_ptr.vmem [resolvable:$true] %s236
          %239 = dma.vmem_to_smem %s237, 16, [#allocation9], [#allocation8]
        $region24: #{tpu_custom_call.1} parent=11 // pred_fallthru
          _
        // Predicated region
        $region25: #{tpu_custom_call.1} parent=11 // pred_check
          %p240 = pneg %p145
        $region26: #{tpu_custom_call.1} parent=11 // pred_check_branch
          %242 = sbr.rel (%p240) target = $region28
        $region27: #{tpu_custom_call.1} parent=11 // pred_region
          %s244 = ssub.s32 16, 16
          %245 = vsyncadd [#allocation11], %s244
          %s247 = sshll.u32 %s4, 4
          %s248 = int_to_ptr.vmem [resolvable:$true] %s247
          %250 = dma.vmem_to_smem %s248, 16, [#allocation10], [#allocation11]
        $region28: #{tpu_custom_call.1} parent=11 // pred_fallthru
          _
        // Predicated region
        $region29: #{tpu_custom_call.1} parent=11 // pred_check
          %p251 = pneg %p166
        $region30: #{tpu_custom_call.1} parent=11 // pred_check_branch
          %253 = sbr.rel (%p251) target = $region32
        $region31: #{tpu_custom_call.1} parent=11 // pred_region
          %s255 = ssub.s32 16, 16
          %256 = vsyncadd [#allocation11], %s255
          %s258 = sshll.u32 %s5, 4
          %s259 = int_to_ptr.vmem [resolvable:$true] %s258
          %261 = dma.vmem_to_smem %s259, 16, [#allocation12], [#allocation11]
        $region32: #{tpu_custom_call.1} parent=11 // pred_fallthru
          _
      $region12: #{tpu_custom_call.1} parent=5 // pred_fallthru
        _
      %p262 = scmp.lt.s32.totalorder %s21, 2
      // Predicated region
      $region33: #{tpu_custom_call.1} parent=5 // pred_check
        %p263 = pneg %p262
      $region34: #{tpu_custom_call.1} parent=5 // pred_check_branch
        %265 = sbr.rel (%p263) target = $region36
      $region35: #{tpu_custom_call.1} parent=5 // pred_region
        // Predicated region
        $region37: #{tpu_custom_call.1} parent=35 // pred_check
          %p266 = pneg %p55
        $region38: #{tpu_custom_call.1} parent=35 // pred_check_branch
          %268 = sbr.rel (%p266) target = $region40
        $region39: #{tpu_custom_call.1} parent=35 // pred_region
          %s269 = sand.u32 %s45, 1
          %s270 = scalar_lea.sflag [#allocation3], %s269
          %s271 = sand.u32 %s45, 1
          %s272 = smul.addr %s271, 8
          %s273 = scalar_lea.vmem [#allocation2], %s272
          %s275 = ssub.s32 128, 128
          %276 = vsyncadd %s270, %s275
          %s277 = smul.addr %s28, 4
          %s278 = sadd.s32 %s29, %s277
          %s279 = smul.addr %s278, 32
          %s280 = scalar_lea.hbm %s0, %s279
          %s281 = sshll.u32 %s273, 4
          %s282 = int_to_ptr.vmem [resolvable:$true] %s281
          %287 = dma.hbm_to_vmem [thread:$0]  %s280, 128, %s282, %s270, 32, 32, 2
        $region40: #{tpu_custom_call.1} parent=35 // pred_fallthru
          _
      $region36: #{tpu_custom_call.1} parent=5 // pred_fallthru
        _
      %p288 = scmp.le.s32.totalorder 1, %s21
      %p289 = scmp.lt.s32.totalorder %s21, 3
      %p290 = pnand %p288, %p289
      %p291 = pneg %p290
      // Predicated region
      $region41: #{tpu_custom_call.1} parent=5 // pred_check
        _
      $region42: #{tpu_custom_call.1} parent=5 // pred_check_branch
        %293 = sbr.rel (%p290) target = $region44
      $region43: #{tpu_custom_call.1} parent=5 // pred_region
        %s294 = ssub.s32 %s21, 1
        %s295 = sand.u32 %s48, 1
        %s296 = scalar_lea.sflag [#allocation3], %s295
        %s297 = sand.u32 %s48, 1
        %s298 = smul.addr %s297, 8
        %s299 = scalar_lea.vmem [#allocation2], %s298
        // Predicated region
        $region45: #{tpu_custom_call.1} parent=43 // pred_check
          %p300 = pneg %p61
        $region46: #{tpu_custom_call.1} parent=43 // pred_check_branch
          %302 = sbr.rel (%p300) target = $region48
        $region47: #{tpu_custom_call.1} parent=43 // pred_region
          %303 = dma.done %s296, 128
        $region48: #{tpu_custom_call.1} parent=43 // pred_fallthru
          _
        // Predicated region
        $region49: #{tpu_custom_call.1} parent=43 // pred_check
          %p304 = pneg %p82
        $region50: #{tpu_custom_call.1} parent=43 // pred_check_branch
          %306 = sbr.rel (%p304) target = $region52
        $region51: #{tpu_custom_call.1} parent=43 // pred_region
          %307 = dma.done [#allocation5], 16
        $region52: #{tpu_custom_call.1} parent=43 // pred_fallthru
          _
        // Predicated region
        $region53: #{tpu_custom_call.1} parent=43 // pred_check
          %p308 = pneg %p103
        $region54: #{tpu_custom_call.1} parent=43 // pred_check_branch
          %310 = sbr.rel (%p308) target = $region56
        $region55: #{tpu_custom_call.1} parent=43 // pred_region
          %311 = dma.done [#allocation8], 16
        $region56: #{tpu_custom_call.1} parent=43 // pred_fallthru
          _
        // Predicated region
        $region57: #{tpu_custom_call.1} parent=43 // pred_check
          %p312 = pneg %p124
        $region58: #{tpu_custom_call.1} parent=43 // pred_check_branch
          %314 = sbr.rel (%p312) target = $region60
        $region59: #{tpu_custom_call.1} parent=43 // pred_region
          %315 = dma.done [#allocation8], 16
        $region60: #{tpu_custom_call.1} parent=43 // pred_fallthru
          _
        // Predicated region
        $region61: #{tpu_custom_call.1} parent=43 // pred_check
          %p316 = pneg %p145
        $region62: #{tpu_custom_call.1} parent=43 // pred_check_branch
          %318 = sbr.rel (%p316) target = $region64
        $region63: #{tpu_custom_call.1} parent=43 // pred_region
          %319 = dma.done [#allocation11], 16
        $region64: #{tpu_custom_call.1} parent=43 // pred_fallthru
          _
        // Predicated region
        $region65: #{tpu_custom_call.1} parent=43 // pred_check
          %p320 = pneg %p166
        $region66: #{tpu_custom_call.1} parent=43 // pred_check_branch
          %322 = sbr.rel (%p320) target = $region68
        $region67: #{tpu_custom_call.1} parent=43 // pred_region
          %323 = dma.done [#allocation11], 16
        $region68: #{tpu_custom_call.1} parent=43 // pred_fallthru
          _
        %324 = sfence
        %s325 = sand.u32 %s48, 1
        %s326 = scalar_lea.sflag [#allocation3], %s325
        %s327 = sand.u32 %s48, 1
        %s328 = smul.addr %s327, 8
        %s329 = scalar_lea.vmem [#allocation2], %s328
        %p330 = pneg %p61
        %p331 = pneg %p58
        %p332 = pneg %p82
        %p333 = pneg %p79
        %p334 = pneg %p103
        %p335 = pneg %p100
        %p336 = pneg %p124
        %p337 = pneg %p121
        %p338 = pneg %p145
        %p339 = pneg %p142
        %p340 = pneg %p166
        %p341 = pneg %p163
        %p342 = pneg %p192
        %p343 = pneg %p189
        %s344 = sand.u32 %s179, 1
        %s345 = scalar_lea.sflag [#allocation4], %s344
        %s346 = sand.u32 %s179, 1
        %s347 = smul.addr %s346, 2
        %s348 = scalar_lea.vmem [#allocation13], %s347
        %p349 = scmp.eq.s32.totalorder %s31, 0
        // Predicated region
        $region69: #{tpu_custom_call.1} parent=43 // pred_check
          %p350 = pneg %p349
        $region70: #{tpu_custom_call.1} parent=43 // pred_check_branch
          %352 = sbr.rel (%p350) target = $region72
        $region71: #{tpu_custom_call.1} parent=43 // pred_region
          %353 = vst [vmem:[%s348] sm:$0x3] 0.0
        $region72: #{tpu_custom_call.1} parent=43 // pred_fallthru
          _
        %s354 = sld [smem:[#allocation6]]
        %s355 = sld [smem:[#allocation6 + $0x1]]
        %s356 = sld [smem:[#allocation6 + $0x2]]
        %s357 = sld [smem:[#allocation6 + $0x3]]
        %s358 = sld [smem:[#allocation6 + $0x4]]
        %s359 = sld [smem:[#allocation6 + $0x5]]
        %s360 = sld [smem:[#allocation6 + $0x6]]
        %s361 = sld [smem:[#allocation6 + $0x7]]
        %s362 = sld [smem:[#allocation6 + $0x8]]
        %s363 = sld [smem:[#allocation6 + $0x9]]
        %s364 = sld [smem:[#allocation6 + $0xa]]
        %s365 = sld [smem:[#allocation6 + $0xb]]
        %s366 = sld [smem:[#allocation6 + $0xc]]
        %s367 = sld [smem:[#allocation6 + $0xd]]
        %s368 = sld [smem:[#allocation6 + $0xe]]
        %s369 = sld [smem:[#allocation6 + $0xf]]
        %s370 = sld [smem:[#allocation6 + $0x10]]
        %s371 = sld [smem:[#allocation6 + $0x11]]
        %s372 = sld [smem:[#allocation6 + $0x12]]
        %s373 = sld [smem:[#allocation6 + $0x13]]
        %s374 = sld [smem:[#allocation6 + $0x14]]
        %s375 = sld [smem:[#allocation6 + $0x15]]
        %s376 = sld [smem:[#allocation6 + $0x16]]
        %s377 = sld [smem:[#allocation6 + $0x17]]
        %s378 = sld [smem:[#allocation6 + $0x18]]
        %s379 = sld [smem:[#allocation6 + $0x19]]
        %s380 = sld [smem:[#allocation6 + $0x1a]]
        %s381 = sld [smem:[#allocation6 + $0x1b]]
        %s382 = sld [smem:[#allocation6 + $0x1c]]
        %s383 = sld [smem:[#allocation6 + $0x1d]]
        %s384 = sld [smem:[#allocation6 + $0x1e]]
        %s385 = sld [smem:[#allocation6 + $0x1f]]
        %s386 = sld [smem:[#allocation6 + $0x20]]
        %s387 = sld [smem:[#allocation6 + $0x21]]
        %s388 = sld [smem:[#allocation6 + $0x22]]
        %s389 = sld [smem:[#allocation6 + $0x23]]
        %s390 = sld [smem:[#allocation6 + $0x24]]
        %s391 = sld [smem:[#allocation6 + $0x25]]
        %s392 = sld [smem:[#allocation6 + $0x26]]
        %s393 = sld [smem:[#allocation6 + $0x27]]
        %s394 = sld [smem:[#allocation6 + $0x28]]
        %s395 = sld [smem:[#allocation6 + $0x29]]
        %s396 = sld [smem:[#allocation6 + $0x2a]]
        %s397 = sld [smem:[#allocation6 + $0x2b]]
        %s398 = sld [smem:[#allocation6 + $0x2c]]
        %s399 = sld [smem:[#allocation6 + $0x2d]]
        %s400 = sld [smem:[#allocation6 + $0x2e]]
        %s401 = sld [smem:[#allocation6 + $0x2f]]
        %s402 = sld [smem:[#allocation6 + $0x30]]
        %s403 = sld [smem:[#allocation6 + $0x31]]
        %s404 = sld [smem:[#allocation6 + $0x32]]
        %s405 = sld [smem:[#allocation6 + $0x33]]
        %s406 = sld [smem:[#allocation6 + $0x34]]
        %s407 = sld [smem:[#allocation6 + $0x35]]
        %s408 = sld [smem:[#allocation6 + $0x36]]
        %s409 = sld [smem:[#allocation6 + $0x37]]
        %s410 = sld [smem:[#allocation6 + $0x38]]
        %s411 = sld [smem:[#allocation6 + $0x39]]
        %s412 = sld [smem:[#allocation6 + $0x3a]]
        %s413 = sld [smem:[#allocation6 + $0x3b]]
        %s414 = sld [smem:[#allocation6 + $0x3c]]
        %s415 = sld [smem:[#allocation6 + $0x3d]]
        %s416 = sld [smem:[#allocation6 + $0x3e]]
        %s417 = sld [smem:[#allocation6 + $0x3f]]
        %s418 = sld [smem:[#allocation7]]
        %s419 = sld [smem:[#allocation7 + $0x1]]
        %s420 = sld [smem:[#allocation7 + $0x2]]
        %s421 = sld [smem:[#allocation7 + $0x3]]
        %s422 = sld [smem:[#allocation7 + $0x4]]
        %s423 = sld [smem:[#allocation7 + $0x5]]
        %s424 = sld [smem:[#allocation7 + $0x6]]
        %s425 = sld [smem:[#allocation7 + $0x7]]
        %s426 = sld [smem:[#allocation7 + $0x8]]
        %s427 = sld [smem:[#allocation7 + $0x9]]
        %s428 = sld [smem:[#allocation7 + $0xa]]
        %s429 = sld [smem:[#allocation7 + $0xb]]
        %s430 = sld [smem:[#allocation7 + $0xc]]
        %s431 = sld [smem:[#allocation7 + $0xd]]
        %s432 = sld [smem:[#allocation7 + $0xe]]
        %s433 = sld [smem:[#allocation7 + $0xf]]
        %s434 = sld [smem:[#allocation9]]
        %s435 = sld [smem:[#allocation9 + $0x1]]
        %s436 = sld [smem:[#allocation9 + $0x2]]
        %s437 = sld [smem:[#allocation9 + $0x3]]
        %s438 = sld [smem:[#allocation9 + $0x4]]
        %s439 = sld [smem:[#allocation9 + $0x5]]
        %s440 = sld [smem:[#allocation9 + $0x6]]
        %s441 = sld [smem:[#allocation9 + $0x7]]
        %s442 = sld [smem:[#allocation9 + $0x8]]
        %s443 = sld [smem:[#allocation9 + $0x9]]
        %s444 = sld [smem:[#allocation9 + $0xa]]
        %s445 = sld [smem:[#allocation9 + $0xb]]
        %s446 = sld [smem:[#allocation9 + $0xc]]
        %s447 = sld [smem:[#allocation9 + $0xd]]
        %s448 = sld [smem:[#allocation9 + $0xe]]
        %s449 = sld [smem:[#allocation9 + $0xf]]
        %s450 = sld [smem:[#allocation9 + $0x10]]
        %s451 = sld [smem:[#allocation9 + $0x11]]
        %s452 = sld [smem:[#allocation9 + $0x12]]
        %s453 = sld [smem:[#allocation9 + $0x13]]
        %s454 = sld [smem:[#allocation9 + $0x14]]
        %s455 = sld [smem:[#allocation9 + $0x15]]
        %s456 = sld [smem:[#allocation9 + $0x16]]
        %s457 = sld [smem:[#allocation9 + $0x17]]
        %s458 = sld [smem:[#allocation9 + $0x18]]
        %s459 = sld [smem:[#allocation9 + $0x19]]
        %s460 = sld [smem:[#allocation9 + $0x1a]]
        %s461 = sld [smem:[#allocation9 + $0x1b]]
        %s462 = sld [smem:[#allocation9 + $0x1c]]
        %s463 = sld [smem:[#allocation9 + $0x1d]]
        %s464 = sld [smem:[#allocation9 + $0x1e]]
        %s465 = sld [smem:[#allocation9 + $0x1f]]
        %s466 = sld [smem:[#allocation9 + $0x20]]
        %s467 = sld [smem:[#allocation9 + $0x21]]
        %s468 = sld [smem:[#allocation9 + $0x22]]
        %s469 = sld [smem:[#allocation9 + $0x23]]
        %s470 = sld [smem:[#allocation9 + $0x24]]
        %s471 = sld [smem:[#allocation9 + $0x25]]
        %s472 = sld [smem:[#allocation9 + $0x26]]
        %s473 = sld [smem:[#allocation9 + $0x27]]
        %s474 = sld [smem:[#allocation9 + $0x28]]
        %s475 = sld [smem:[#allocation9 + $0x29]]
        %s476 = sld [smem:[#allocation9 + $0x2a]]
        %s477 = sld [smem:[#allocation9 + $0x2b]]
        %s478 = sld [smem:[#allocation9 + $0x2c]]
        %s479 = sld [smem:[#allocation9 + $0x2d]]
        %s480 = sld [smem:[#allocation9 + $0x2e]]
        %s481 = sld [smem:[#allocation9 + $0x2f]]
        %s482 = sld [smem:[#allocation9 + $0x30]]
        %s483 = sld [smem:[#allocation9 + $0x31]]
        %s484 = sld [smem:[#allocation9 + $0x32]]
        %s485 = sld [smem:[#allocation9 + $0x33]]
        %s486 = sld [smem:[#allocation9 + $0x34]]
        %s487 = sld [smem:[#allocation9 + $0x35]]
        %s488 = sld [smem:[#allocation9 + $0x36]]
        %s489 = sld [smem:[#allocation9 + $0x37]]
        %s490 = sld [smem:[#allocation9 + $0x38]]
        %s491 = sld [smem:[#allocation9 + $0x39]]
        %s492 = sld [smem:[#allocation9 + $0x3a]]
        %s493 = sld [smem:[#allocation9 + $0x3b]]
        %s494 = sld [smem:[#allocation9 + $0x3c]]
        %s495 = sld [smem:[#allocation9 + $0x3d]]
        %s496 = sld [smem:[#allocation9 + $0x3e]]
        %s497 = sld [smem:[#allocation9 + $0x3f]]
        %s498 = sld [smem:[#allocation10]]
        %s499 = sld [smem:[#allocation10 + $0x1]]
        %s500 = sld [smem:[#allocation10 + $0x2]]
        %s501 = sld [smem:[#allocation10 + $0x3]]
        %s502 = sld [smem:[#allocation10 + $0x4]]
        %s503 = sld [smem:[#allocation10 + $0x5]]
        %s504 = sld [smem:[#allocation10 + $0x6]]
        %s505 = sld [smem:[#allocation10 + $0x7]]
        %s506 = sld [smem:[#allocation12]]
        %s507 = sld [smem:[#allocation12 + $0x1]]
        %v508 = vld [vmem:[%s299] sm:$0x3]
        %s509 = scalar_lea.vmem %s299, 2 [#allocation2]
        %v510 = vld [vmem:[%s509] sm:$0x3]
        %s511 = scalar_lea.vmem %s299, 4 [#allocation2]
        %v512 = vld [vmem:[%s511] sm:$0x3]
        %s513 = scalar_lea.vmem %s299, 6 [#allocation2]
        %v514 = vld [vmem:[%s513] sm:$0x3]
        %v515 = vstv %s354
        %v516 = vmul.f32 %v515, %v508
        %v517 = vstv %s362
        %v518 = vmul.f32 %v517, %v510
        %v519 = vadd.f32 %v516, %v518
        %v520 = vstv %s370
        %v521 = vmul.f32 %v520, %v512
        %v522 = vadd.f32 %v519, %v521
        %v523 = vstv %s378
        %v524 = vmul.f32 %v523, %v514
        %v525 = vadd.f32 %v522, %v524
        %v526 = vstv %s418
        %v527 = vadd.f32 %v525, %v526
        %v528 = vmax.f32 %v527, 0.0
        %v529 = vstv %s355
        %v530 = vmul.f32 %v529, %v508
        %v531 = vstv %s363
        %v532 = vmul.f32 %v531, %v510
        %v533 = vadd.f32 %v530, %v532
        %v534 = vstv %s371
        %v535 = vmul.f32 %v534, %v512
        %v536 = vadd.f32 %v533, %v535
        %v537 = vstv %s379
        %v538 = vmul.f32 %v537, %v514
        %v539 = vadd.f32 %v536, %v538
        %v540 = vstv %s419
        %v541 = vadd.f32 %v539, %v540
        %v542 = vmax.f32 %v541, 0.0
        %v543 = vstv %s356
        %v544 = vmul.f32 %v543, %v508
        %v545 = vstv %s364
        %v546 = vmul.f32 %v545, %v510
        %v547 = vadd.f32 %v544, %v546
        %v548 = vstv %s372
        %v549 = vmul.f32 %v548, %v512
        %v550 = vadd.f32 %v547, %v549
        %v551 = vstv %s380
        %v552 = vmul.f32 %v551, %v514
        %v553 = vadd.f32 %v550, %v552
        %v554 = vstv %s420
        %v555 = vadd.f32 %v553, %v554
        %v556 = vmax.f32 %v555, 0.0
        %v557 = vstv %s357
        %v558 = vmul.f32 %v557, %v508
        %v559 = vstv %s365
        %v560 = vmul.f32 %v559, %v510
        %v561 = vadd.f32 %v558, %v560
        %v562 = vstv %s373
        %v563 = vmul.f32 %v562, %v512
        %v564 = vadd.f32 %v561, %v563
        %v565 = vstv %s381
        %v566 = vmul.f32 %v565, %v514
        %v567 = vadd.f32 %v564, %v566
        %v568 = vstv %s421
        %v569 = vadd.f32 %v567, %v568
        %v570 = vmax.f32 %v569, 0.0
        %v571 = vstv %s358
        %v572 = vmul.f32 %v571, %v508
        %v573 = vstv %s366
        %v574 = vmul.f32 %v573, %v510
        %v575 = vadd.f32 %v572, %v574
        %v576 = vstv %s374
        %v577 = vmul.f32 %v576, %v512
        %v578 = vadd.f32 %v575, %v577
        %v579 = vstv %s382
        %v580 = vmul.f32 %v579, %v514
        %v581 = vadd.f32 %v578, %v580
        %v582 = vstv %s422
        %v583 = vadd.f32 %v581, %v582
        %v584 = vmax.f32 %v583, 0.0
        %v585 = vstv %s359
        %v586 = vmul.f32 %v585, %v508
        %v587 = vstv %s367
        %v588 = vmul.f32 %v587, %v510
        %v589 = vadd.f32 %v586, %v588
        %v590 = vstv %s375
        %v591 = vmul.f32 %v590, %v512
        %v592 = vadd.f32 %v589, %v591
        %v593 = vstv %s383
        %v594 = vmul.f32 %v593, %v514
        %v595 = vadd.f32 %v592, %v594
        %v596 = vstv %s423
        %v597 = vadd.f32 %v595, %v596
        %v598 = vmax.f32 %v597, 0.0
        %v599 = vstv %s360
        %v600 = vmul.f32 %v599, %v508
        %v601 = vstv %s368
        %v602 = vmul.f32 %v601, %v510
        %v603 = vadd.f32 %v600, %v602
        %v604 = vstv %s376
        %v605 = vmul.f32 %v604, %v512
        %v606 = vadd.f32 %v603, %v605
        %v607 = vstv %s384
        %v608 = vmul.f32 %v607, %v514
        %v609 = vadd.f32 %v606, %v608
        %v610 = vstv %s424
        %v611 = vadd.f32 %v609, %v610
        %v612 = vmax.f32 %v611, 0.0
        %v613 = vstv %s361
        %v614 = vmul.f32 %v613, %v508
        %v615 = vstv %s369
        %v616 = vmul.f32 %v615, %v510
        %v617 = vadd.f32 %v614, %v616
        %v618 = vstv %s377
        %v619 = vmul.f32 %v618, %v512
        %v620 = vadd.f32 %v617, %v619
        %v621 = vstv %s385
        %v622 = vmul.f32 %v621, %v514
        %v623 = vadd.f32 %v620, %v622
        %v624 = vstv %s425
        %v625 = vadd.f32 %v623, %v624
        %v626 = vmax.f32 %v625, 0.0
        %v627 = vstv %s434
        %v628 = vmul.f32 %v627, %v528
        %v629 = vstv %s438
        %v630 = vmul.f32 %v629, %v542
        %v631 = vadd.f32 %v628, %v630
        %v632 = vstv %s442
        %v633 = vmul.f32 %v632, %v556
        %v634 = vadd.f32 %v631, %v633
        %v635 = vstv %s446
        %v636 = vmul.f32 %v635, %v570
        %v637 = vadd.f32 %v634, %v636
        %v638 = vstv %s450
        %v639 = vmul.f32 %v638, %v584
        %v640 = vadd.f32 %v637, %v639
        %v641 = vstv %s454
        %v642 = vmul.f32 %v641, %v598
        %v643 = vadd.f32 %v640, %v642
        %v644 = vstv %s458
        %v645 = vmul.f32 %v644, %v612
        %v646 = vadd.f32 %v643, %v645
        %v647 = vstv %s462
        %v648 = vmul.f32 %v647, %v626
        %v649 = vadd.f32 %v646, %v648
        %v650 = vstv %s498
        %v651 = vadd.f32 %v649, %v650
        %v652 = vsub.f32 %v508, %v651
        %v653 = vmul.f32 %v652, %v652
        %v654 = vadd.f32 %v653, 0.0
        %v655 = vstv %s435
        %v656 = vmul.f32 %v655, %v528
        %v657 = vstv %s439
        %v658 = vmul.f32 %v657, %v542
        %v659 = vadd.f32 %v656, %v658
        %v660 = vstv %s443
        %v661 = vmul.f32 %v660, %v556
        %v662 = vadd.f32 %v659, %v661
        %v663 = vstv %s447
        %v664 = vmul.f32 %v663, %v570
        %v665 = vadd.f32 %v662, %v664
        %v666 = vstv %s451
        %v667 = vmul.f32 %v666, %v584
        %v668 = vadd.f32 %v665, %v667
        %v669 = vstv %s455
        %v670 = vmul.f32 %v669, %v598
        %v671 = vadd.f32 %v668, %v670
        %v672 = vstv %s459
        %v673 = vmul.f32 %v672, %v612
        %v674 = vadd.f32 %v671, %v673
        %v675 = vstv %s463
        %v676 = vmul.f32 %v675, %v626
        %v677 = vadd.f32 %v674, %v676
        %v678 = vstv %s499
        %v679 = vadd.f32 %v677, %v678
        %v680 = vsub.f32 %v510, %v679
        %v681 = vmul.f32 %v680, %v680
        %v682 = vadd.f32 %v654, %v681
        %v683 = vstv %s436
        %v684 = vmul.f32 %v683, %v528
        %v685 = vstv %s440
        %v686 = vmul.f32 %v685, %v542
        %v687 = vadd.f32 %v684, %v686
        %v688 = vstv %s444
        %v689 = vmul.f32 %v688, %v556
        %v690 = vadd.f32 %v687, %v689
        %v691 = vstv %s448
        %v692 = vmul.f32 %v691, %v570
        %v693 = vadd.f32 %v690, %v692
        %v694 = vstv %s452
        %v695 = vmul.f32 %v694, %v584
        %v696 = vadd.f32 %v693, %v695
        %v697 = vstv %s456
        %v698 = vmul.f32 %v697, %v598
        %v699 = vadd.f32 %v696, %v698
        %v700 = vstv %s460
        %v701 = vmul.f32 %v700, %v612
        %v702 = vadd.f32 %v699, %v701
        %v703 = vstv %s464
        %v704 = vmul.f32 %v703, %v626
        %v705 = vadd.f32 %v702, %v704
        %v706 = vstv %s500
        %v707 = vadd.f32 %v705, %v706
        %v708 = vsub.f32 %v512, %v707
        %v709 = vmul.f32 %v708, %v708
        %v710 = vadd.f32 %v682, %v709
        %v711 = vstv %s437
        %v712 = vmul.f32 %v711, %v528
        %v713 = vstv %s441
        %v714 = vmul.f32 %v713, %v542
        %v715 = vadd.f32 %v712, %v714
        %v716 = vstv %s445
        %v717 = vmul.f32 %v716, %v556
        %v718 = vadd.f32 %v715, %v717
        %v719 = vstv %s449
        %v720 = vmul.f32 %v719, %v570
        %v721 = vadd.f32 %v718, %v720
        %v722 = vstv %s453
        %v723 = vmul.f32 %v722, %v584
        %v724 = vadd.f32 %v721, %v723
        %v725 = vstv %s457
        %v726 = vmul.f32 %v725, %v598
        %v727 = vadd.f32 %v724, %v726
        %v728 = vstv %s461
        %v729 = vmul.f32 %v728, %v612
        %v730 = vadd.f32 %v727, %v729
        %v731 = vstv %s465
        %v732 = vmul.f32 %v731, %v626
        %v733 = vadd.f32 %v730, %v732
        %v734 = vstv %s501
        %v735 = vadd.f32 %v733, %v734
        %v736 = vsub.f32 %v514, %v735
        %v737 = vmul.f32 %v736, %v736
        %v738 = vadd.f32 %v710, %v737
        %v739 = vstv %s506
        %v740 = vmul.f32 %v739, %v738
        %v741 = vadd.f32 %v740, 0.0
        %v742 = vstv %s386
        %v743 = vmul.f32 %v742, %v508
        %v744 = vstv %s394
        %v745 = vmul.f32 %v744, %v510
        %v746 = vadd.f32 %v743, %v745
        %v747 = vstv %s402
        %v748 = vmul.f32 %v747, %v512
        %v749 = vadd.f32 %v746, %v748
        %v750 = vstv %s410
        %v751 = vmul.f32 %v750, %v514
        %v752 = vadd.f32 %v749, %v751
        %v753 = vstv %s426
        %v754 = vadd.f32 %v752, %v753
        %v755 = vmax.f32 %v754, 0.0
        %v756 = vstv %s387
        %v757 = vmul.f32 %v756, %v508
        %v758 = vstv %s395
        %v759 = vmul.f32 %v758, %v510
        %v760 = vadd.f32 %v757, %v759
        %v761 = vstv %s403
        %v762 = vmul.f32 %v761, %v512
        %v763 = vadd.f32 %v760, %v762
        %v764 = vstv %s411
        %v765 = vmul.f32 %v764, %v514
        %v766 = vadd.f32 %v763, %v765
        %v767 = vstv %s427
        %v768 = vadd.f32 %v766, %v767
        %v769 = vmax.f32 %v768, 0.0
        %v770 = vstv %s388
        %v771 = vmul.f32 %v770, %v508
        %v772 = vstv %s396
        %v773 = vmul.f32 %v772, %v510
        %v774 = vadd.f32 %v771, %v773
        %v775 = vstv %s404
        %v776 = vmul.f32 %v775, %v512
        %v777 = vadd.f32 %v774, %v776
        %v778 = vstv %s412
        %v779 = vmul.f32 %v778, %v514
        %v780 = vadd.f32 %v777, %v779
        %v781 = vstv %s428
        %v782 = vadd.f32 %v780, %v781
        %v783 = vmax.f32 %v782, 0.0
        %v784 = vstv %s389
        %v785 = vmul.f32 %v784, %v508
        %v786 = vstv %s397
        %v787 = vmul.f32 %v786, %v510
        %v788 = vadd.f32 %v785, %v787
        %v789 = vstv %s405
        %v790 = vmul.f32 %v789, %v512
        %v791 = vadd.f32 %v788, %v790
        %v792 = vstv %s413
        %v793 = vmul.f32 %v792, %v514
        %v794 = vadd.f32 %v791, %v793
        %v795 = vstv %s429
        %v796 = vadd.f32 %v794, %v795
        %v797 = vmax.f32 %v796, 0.0
        %v798 = vstv %s390
        %v799 = vmul.f32 %v798, %v508
        %v800 = vstv %s398
        %v801 = vmul.f32 %v800, %v510
        %v802 = vadd.f32 %v799, %v801
        %v803 = vstv %s406
        %v804 = vmul.f32 %v803, %v512
        %v805 = vadd.f32 %v802, %v804
        %v806 = vstv %s414
        %v807 = vmul.f32 %v806, %v514
        %v808 = vadd.f32 %v805, %v807
        %v809 = vstv %s430
        %v810 = vadd.f32 %v808, %v809
        %v811 = vmax.f32 %v810, 0.0
        %v812 = vstv %s391
        %v813 = vmul.f32 %v812, %v508
        %v814 = vstv %s399
        %v815 = vmul.f32 %v814, %v510
        %v816 = vadd.f32 %v813, %v815
        %v817 = vstv %s407
        %v818 = vmul.f32 %v817, %v512
        %v819 = vadd.f32 %v816, %v818
        %v820 = vstv %s415
        %v821 = vmul.f32 %v820, %v514
        %v822 = vadd.f32 %v819, %v821
        %v823 = vstv %s431
        %v824 = vadd.f32 %v822, %v823
        %v825 = vmax.f32 %v824, 0.0
        %v826 = vstv %s392
        %v827 = vmul.f32 %v826, %v508
        %v828 = vstv %s400
        %v829 = vmul.f32 %v828, %v510
        %v830 = vadd.f32 %v827, %v829
        %v831 = vstv %s408
        %v832 = vmul.f32 %v831, %v512
        %v833 = vadd.f32 %v830, %v832
        %v834 = vstv %s416
        %v835 = vmul.f32 %v834, %v514
        %v836 = vadd.f32 %v833, %v835
        %v837 = vstv %s432
        %v838 = vadd.f32 %v836, %v837
        %v839 = vmax.f32 %v838, 0.0
        %v840 = vstv %s393
        %v841 = vmul.f32 %v840, %v508
        %v842 = vstv %s401
        %v843 = vmul.f32 %v842, %v510
        %v844 = vadd.f32 %v841, %v843
        %v845 = vstv %s409
        %v846 = vmul.f32 %v845, %v512
        %v847 = vadd.f32 %v844, %v846
        %v848 = vstv %s417
        %v849 = vmul.f32 %v848, %v514
        %v850 = vadd.f32 %v847, %v849
        %v851 = vstv %s433
        %v852 = vadd.f32 %v850, %v851
        %v853 = vmax.f32 %v852, 0.0
        %v854 = vstv %s466
        %v855 = vmul.f32 %v854, %v755
        %v856 = vstv %s470
        %v857 = vmul.f32 %v856, %v769
        %v858 = vadd.f32 %v855, %v857
        %v859 = vstv %s474
        %v860 = vmul.f32 %v859, %v783
        %v861 = vadd.f32 %v858, %v860
        %v862 = vstv %s478
        %v863 = vmul.f32 %v862, %v797
        %v864 = vadd.f32 %v861, %v863
        %v865 = vstv %s482
        %v866 = vmul.f32 %v865, %v811
        %v867 = vadd.f32 %v864, %v866
        %v868 = vstv %s486
        %v869 = vmul.f32 %v868, %v825
        %v870 = vadd.f32 %v867, %v869
        %v871 = vstv %s490
        %v872 = vmul.f32 %v871, %v839
        %v873 = vadd.f32 %v870, %v872
        %v874 = vstv %s494
        %v875 = vmul.f32 %v874, %v853
        %v876 = vadd.f32 %v873, %v875
        %v877 = vstv %s502
        %v878 = vadd.f32 %v876, %v877
        %v879 = vsub.f32 %v508, %v878
        %v880 = vmul.f32 %v879, %v879
        %v881 = vadd.f32 %v880, 0.0
        %v882 = vstv %s467
        %v883 = vmul.f32 %v882, %v755
        %v884 = vstv %s471
        %v885 = vmul.f32 %v884, %v769
        %v886 = vadd.f32 %v883, %v885
        %v887 = vstv %s475
        %v888 = vmul.f32 %v887, %v783
        %v889 = vadd.f32 %v886, %v888
        %v890 = vstv %s479
        %v891 = vmul.f32 %v890, %v797
        %v892 = vadd.f32 %v889, %v891
        %v893 = vstv %s483
        %v894 = vmul.f32 %v893, %v811
        %v895 = vadd.f32 %v892, %v894
        %v896 = vstv %s487
        %v897 = vmul.f32 %v896, %v825
        %v898 = vadd.f32 %v895, %v897
        %v899 = vstv %s491
        %v900 = vmul.f32 %v899, %v839
        %v901 = vadd.f32 %v898, %v900
        %v902 = vstv %s495
        %v903 = vmul.f32 %v902, %v853
        %v904 = vadd.f32 %v901, %v903
        %v905 = vstv %s503
        %v906 = vadd.f32 %v904, %v905
        %v907 = vsub.f32 %v510, %v906
        %v908 = vmul.f32 %v907, %v907
        %v909 = vadd.f32 %v881, %v908
        %v910 = vstv %s468
        %v911 = vmul.f32 %v910, %v755
        %v912 = vstv %s472
        %v913 = vmul.f32 %v912, %v769
        %v914 = vadd.f32 %v911, %v913
        %v915 = vstv %s476
        %v916 = vmul.f32 %v915, %v783
        %v917 = vadd.f32 %v914, %v916
        %v918 = vstv %s480
        %v919 = vmul.f32 %v918, %v797
        %v920 = vadd.f32 %v917, %v919
        %v921 = vstv %s484
        %v922 = vmul.f32 %v921, %v811
        %v923 = vadd.f32 %v920, %v922
        %v924 = vstv %s488
        %v925 = vmul.f32 %v924, %v825
        %v926 = vadd.f32 %v923, %v925
        %v927 = vstv %s492
        %v928 = vmul.f32 %v927, %v839
        %v929 = vadd.f32 %v926, %v928
        %v930 = vstv %s496
        %v931 = vmul.f32 %v930, %v853
        %v932 = vadd.f32 %v929, %v931
        %v933 = vstv %s504
        %v934 = vadd.f32 %v932, %v933
        %v935 = vsub.f32 %v512, %v934
        %v936 = vmul.f32 %v935, %v935
        %v937 = vadd.f32 %v909, %v936
        %v938 = vstv %s469
        %v939 = vmul.f32 %v938, %v755
        %v940 = vstv %s473
        %v941 = vmul.f32 %v940, %v769
        %v942 = vadd.f32 %v939, %v941
        %v943 = vstv %s477
        %v944 = vmul.f32 %v943, %v783
        %v945 = vadd.f32 %v942, %v944
        %v946 = vstv %s481
        %v947 = vmul.f32 %v946, %v797
        %v948 = vadd.f32 %v945, %v947
        %v949 = vstv %s485
        %v950 = vmul.f32 %v949, %v811
        %v951 = vadd.f32 %v948, %v950
        %v952 = vstv %s489
        %v953 = vmul.f32 %v952, %v825
        %v954 = vadd.f32 %v951, %v953
        %v955 = vstv %s493
        %v956 = vmul.f32 %v955, %v839
        %v957 = vadd.f32 %v954, %v956
        %v958 = vstv %s497
        %v959 = vmul.f32 %v958, %v853
        %v960 = vadd.f32 %v957, %v959
        %v961 = vstv %s505
        %v962 = vadd.f32 %v960, %v961
        %v963 = vsub.f32 %v514, %v962
        %v964 = vmul.f32 %v963, %v963
        %v965 = vadd.f32 %v937, %v964
        %v966 = vstv %s507
        %v967 = vmul.f32 %v966, %v965
        %v968 = vadd.f32 %v741, %v967
        %v969 = vadd.f32 %v968, 0.0
        %v970 = vld [vmem:[%s348] sm:$0x3]
        %v971 = vadd.f32 %v970, %v969
        %972 = vst [vmem:[%s348] sm:$0x3] %v971
        %s973 = sand.u32 %s179, 1
        %s974 = scalar_lea.sflag [#allocation4], %s973
        %s975 = sand.u32 %s179, 1
        %s976 = smul.addr %s975, 2
        %s977 = scalar_lea.vmem [#allocation13], %s976
        // Predicated region
        $region73: #{tpu_custom_call.1} parent=43 // pred_check
          %p978 = pneg %p189
        $region74: #{tpu_custom_call.1} parent=43 // pred_check_branch
          %980 = sbr.rel (%p978) target = $region76
        $region75: #{tpu_custom_call.1} parent=43 // pred_region
          %s982 = ssub.s32 32, 32
          %983 = vsyncadd %s974, %s982
          %s984 = smul.addr %s30, 32
          %s985 = scalar_lea.hbm %s6, %s984
          %s987 = sshll.u32 %s977, 4
          %s988 = int_to_ptr.vmem [resolvable:$true] %s987
          %990 = dma.vmem_to_hbm [thread:$0]  %s988, 32, %s985, %s974
        $region76: #{tpu_custom_call.1} parent=43 // pred_fallthru
          _
      $region44: #{tpu_custom_call.1} parent=5 // pred_fallthru
        _
      %p991 = scmp.le.s32.totalorder 2, %s21
      // Predicated region
      $region77: #{tpu_custom_call.1} parent=5 // pred_check
        %p992 = pneg %p991
      $region78: #{tpu_custom_call.1} parent=5 // pred_check_branch
        %994 = sbr.rel (%p992) target = $region80
      $region79: #{tpu_custom_call.1} parent=5 // pred_region
        %s995 = ssub.s32 %s21, 2
        // Predicated region
        $region81: #{tpu_custom_call.1} parent=79 // pred_check
          %p996 = pneg %p195
        $region82: #{tpu_custom_call.1} parent=79 // pred_check_branch
          %998 = sbr.rel (%p996) target = $region84
        $region83: #{tpu_custom_call.1} parent=79 // pred_region
          %s999 = sand.u32 %s180, 1
          %s1000 = scalar_lea.sflag [#allocation4], %s999
          %s1001 = sand.u32 %s180, 1
          %s1002 = smul.addr %s1001, 2
          %s1003 = scalar_lea.vmem [#allocation13], %s1002
          %1004 = dma.done %s1000, 32
        $region84: #{tpu_custom_call.1} parent=79 // pred_fallthru
          _
      $region80: #{tpu_custom_call.1} parent=5 // pred_fallthru
        _
    $region6: #{tpu_custom_call.1} parent=1 // loop_footer
      %s25 = sadd.s32 1, %s21
    $region7: #{tpu_custom_call.1} parent=1 // loop_footer_branch
      %20 = sbr.rel target = $region3
    $region8: #{tpu_custom_call.1} parent=1 // loop_exit
      _
    %1005 = vsyncpa [#allocation3], 1
    %s1006 = scalar_lea.sflag [#allocation3], 1
    %1007 = vsyncpa %s1006, 1
    %1008 = vsyncpa [#allocation4], 1
    %s1009 = scalar_lea.sflag [#allocation4], 1
    %1010 = vsyncpa %s1009, 1
    %1011 = vsyncpa [#allocation5], 1
    %s1012 = scalar_lea.sflag [#allocation5], 1
    %1013 = vsyncpa %s1012, 1
    %1014 = vsyncpa [#allocation8], 1
    %1015 = vsyncpa [#allocation11], 1

</llo_original>
